<compile_context>
chip_gen: v7x
topology: tpu7x:2x2x1
jax: 0.10.0
libtpu: 0.0.40
codegen_flags: <defaults>
</compile_context>

<pallas_src>
import functools

import jax
import jax.numpy as jnp
from jax.experimental import pallas as pl
from jax.experimental.pallas import tpu as pltpu


def _gelu_tanh(x):
    # tanh-approximate GELU (PyTorch nn.GELU(approximate='tanh')).
    c = 0.7978845608028654  # sqrt(2/pi)
    return 0.5 * x * (1.0 + jnp.tanh(c * (x + 0.044715 * x * x * x)))


def _round_up(n, m):
    return ((n + m - 1) // m) * m


def _tpu_vmem_bytes():
    """Physical per-core VMEM; conservative 64 MiB fallback (works on v7x)."""
    try:
        return int(pltpu.get_tpu_info().vmem_capacity_bytes)
    except Exception:
        return 64 * 1024 * 1024


def _mxu_is_256wide():
    """True on v6e/v7x-class chips (2x256x256 MXU); False on v2-v5 (128-wide)."""
    try:
        kind = jax.devices()[0].device_kind.lower()
    except Exception:
        return False
    if "tpu" not in kind:
        return False
    return not any(t in kind for t in ("v2", "v3", "v4", "v5"))


def _pick_row_tile(rows, full_in, full_mlp, full_out, dtype, weight_bytes,
                   vmem_cap):
    """Row tile sized from the real VMEM budget, honoring the dtype's minimum
    sublane tile, and preferring an even grid with >= 4 steps (2 TCs on v7x)."""
    itemsize = jnp.dtype(dtype).itemsize
    sub = {4: 8, 2: 16, 1: 32}.get(itemsize, 8)
    # Per row: double-buffered input & output tiles + ~2x the live f32
    # intermediates (all H up-head outputs, down-projection temporaries).
    per_row = 2 * (full_in + full_out) * itemsize + 2 * (full_mlp + full_out) * 4
    # Weights/biases are resident (single-buffered); leave compiler headroom.
    budget = int(vmem_cap * 0.75) - int(weight_bytes) - (4 << 20)
    budget = max(budget, 2 << 20)
    cap = max(sub, min(1024, budget // max(per_row, 1)))
    rows_r = _round_up(max(rows, 1), sub)
    cap = min(cap, rows_r)
    cap = max(sub, (cap // sub) * sub)

    def score(t):
        steps = -(-rows_r // t)
        waste = steps * t - rows_r
        # Prefer (>=4 steps, even grid) > bigger tile > less padding.
        return ((steps >= 4) * 2 + (steps % 2 == 0), t, -waste)

    return max(range(sub, cap + 1, sub), key=score)


def _sparse_mlp_kernel(x_ref, wup_ref, bup_ref, wdn_ref, bdn_ref, o_ref, *,
                       heads, d_in, slab, n_pieces, out_w):
    x = x_ref[...]                                   # (TILE, full_dim)

    # ---- up projection (block-diagonal) + bias + GELU ----
    ys = []
    for r in range(heads):
        yr = jnp.dot(x[:, r * d_in:(r + 1) * d_in], wup_ref[r],
                     preferred_element_type=jnp.float32)
        ys.append(_gelu_tanh(yr + bup_ref[r]))       # bup_ref[r]: (1, d_mid)

    # ---- structured permute (folded into weights) + down projection + bias --
    # Piece p covers `group` consecutive down heads; the slab taken from every
    # up-head output is `slab = group*k` wide (lane-aligned when group*k % 128
    # == 0, which the host-side pairing policy guarantees on v6e/v7x).
    pieces = []
    for p in range(n_pieces):
        ph = jnp.concatenate(
            [ys[r][:, p * slab:(p + 1) * slab] for r in range(heads)], axis=1)
        acc = jnp.dot(ph, wdn_ref[p], preferred_element_type=jnp.float32)
        acc = acc + bdn_ref[p]                       # bdn_ref[p]: (1, out_w)
        if out_w % 128 == 0:
            # Direct lane-dense store per piece (no full-width materialization).
            o_ref[:, p * out_w:(p + 1) * out_w] = acc.astype(o_ref.dtype)
        else:
            pieces.append(acc)
    if pieces:
        o_ref[...] = jnp.concatenate(pieces, axis=1).astype(o_ref.dtype)


def sparse_mlp(x, w_up, b_up, w_down, b_down, *, heads, down_group=None):
    """Fused SparseMLP forward.

    x:       (rows, full_dim)
    w_up:    (heads, full_dim // heads, full_mlp // heads)
    b_up:    (full_mlp,)
    w_down:  (heads, full_mlp // heads, full_dim // heads)
    b_down:  (full_dim,)
    down_group: None = auto (pair down heads on 256-MXU chips when k == 64);
                int  = force that group size (must divide heads).
    """
    rows, full_dim = x.shape
    H = heads
    assert full_dim % H == 0
    d_in = full_dim // H
    d_mid = w_up.shape[2]
    full_mlp = H * d_mid
    d_down = w_down.shape[2]
    full_out = H * d_down
    assert w_up.shape == (H, d_in, d_mid)
    assert w_down.shape == (H, d_mid, d_down)
    assert b_up.shape == (full_mlp,) and b_down.shape == (full_out,)
    # Needed to fold the structured PermuteIn into the down weights (holds for
    # the module defaults full_mlp_dim=4096, heads=8).
    assert d_mid % H == 0, \
        "structured-permute folding requires full_mlp_dim % heads**2 == 0"
    k = d_mid // H

    # Fold PermuteIn into the down-weight row order (host-side, one-time):
    # new row r*k + q  <-  old row q*H + r.
    w_down_perm = (w_down.reshape(H, k, H, d_down)
                   .transpose(0, 2, 1, 3)
                   .reshape(H, d_mid, d_down))

    # Down-head grouping ("head pairing"): only pay the 2x down-FLOP cost on
    # 256-wide-MXU chips, where it also doubles the down-matmul N to 256 and
    # makes every activation slab a lane-aligned 128-wide slice.
    if down_group is None:
        group = 2 if (k == 64 and H % 2 == 0 and _mxu_is_256wide()) else 1
    else:
        group = int(down_group)
    assert group >= 1 and H % group == 0

    n_pieces = H // group
    slab = group * k
    out_w = group * d_down
    if group > 1:
        # Block-structured (zero-padded) grouped down weight:
        # Wg[p][r*slab + h2l*k + q, h2l*d_down + e] = w_down[p*G+h2l][q*H+r, e]
        wdp = w_down_perm.reshape(n_pieces, group, H, k, d_down)  # [g,h2l,r,q,e]
        eye = jnp.eye(group, dtype=w_down_perm.dtype)
        w_dn_arg = jnp.einsum("ghrqe,hj->grhqje", wdp, eye).reshape(
            n_pieces, H * slab, out_w)
    else:
        w_dn_arg = w_down_perm                                    # (H, d_mid, d_down)
    b_dn_arg = b_down.reshape(n_pieces, 1, out_w)
    b_up_arg = b_up.reshape(H, 1, d_mid)

    vmem_cap = _tpu_vmem_bytes()
    weight_bytes = (w_up.size * w_up.dtype.itemsize
                    + w_dn_arg.size * w_dn_arg.dtype.itemsize
                    + (b_up.size + b_down.size) * 4)
    tile = _pick_row_tile(rows, full_dim, full_mlp, full_out, x.dtype,
                          weight_bytes, vmem_cap)
    rows_p = _round_up(rows, tile)
    x_p = jnp.pad(x, ((0, rows_p - rows), (0, 0))) if rows_p != rows else x

    vmem_limit = min(int(vmem_cap * 3 // 4), 100 * 1024 * 1024)

    kernel = functools.partial(_sparse_mlp_kernel, heads=H, d_in=d_in,
                               slab=slab, n_pieces=n_pieces, out_w=out_w)

    def _run(weight_pipeline_mode):
        def wspec(shape, index_map):
            # Constant index map -> weights stay resident; single-buffer them.
            if weight_pipeline_mode is None:
                return pl.BlockSpec(shape, index_map)
            return pl.BlockSpec(shape, index_map,
                                pipeline_mode=weight_pipeline_mode)

        grid_spec = pltpu.PrefetchScalarGridSpec(
            num_scalar_prefetch=0,
            grid=(rows_p // tile,),
            in_specs=[
                pl.BlockSpec((tile, full_dim), lambda i: (i, 0)),
                wspec((H, d_in, d_mid), lambda i: (0, 0, 0)),
                wspec((H, 1, d_mid), lambda i: (0, 0, 0)),
                wspec(tuple(w_dn_arg.shape), lambda i: (0, 0, 0)),
                wspec(tuple(b_dn_arg.shape), lambda i: (0, 0, 0)),
            ],
            out_specs=pl.BlockSpec((tile, full_out), lambda i: (i, 0)),
        )
        return pl.pallas_call(
            kernel,
            out_shape=jax.ShapeDtypeStruct((rows_p, full_out), x.dtype),
            grid_spec=grid_spec,
            compiler_params=pltpu.CompilerParams(
                dimension_semantics=("parallel",),
                vmem_limit_bytes=vmem_limit,
            ),
        )(x_p, w_up, b_up_arg, w_dn_arg, b_dn_arg)

    try:
        out = _run(pl.Buffered(1))
    except Exception:
        # pipeline_mode / single-buffering unsupported on this jax version:
        # fall back to the default double-buffered weight specs.
        out = _run(None)

    return out[:rows]


def sparse_mlp_ref(x, w_up, b_up, w_down, b_down, *, heads):
    """Pure-JAX reference mirroring the PyTorch forward exactly."""
    rows, full_dim = x.shape
    H = heads
    d_in = full_dim // H
    d_mid = w_up.shape[2]
    full_mlp = H * d_mid
    # up
    up = jnp.einsum("bhd,hdl->bhl", x.reshape(rows, H, d_in), w_up)
    up = up.reshape(rows, full_mlp) + b_up
    up = _gelu_tanh(up)
    # structured PermuteIn
    block = full_mlp // H
    idx = jnp.arange(full_mlp)
    perm = (idx % H) * block + (idx // H)
    p = up[:, perm]
    # down
    dn = jnp.einsum("bhd,hdl->bhl", p.reshape(rows, H, full_mlp // H), w_down)
    dn = dn.reshape(rows, -1) + b_down
    return dn


if __name__ == "__main__":
    key = jax.random.PRNGKey(0)
    ks = jax.random.split(key, 5)

    # Small shapes consistent with the module: 16 token rows (batch*seq),
    # hidden full_dim=32, heads=4, full_mlp_dim=128.
    rows, full_dim, heads, full_mlp = 16, 32, 4, 128
    d_in = full_dim // heads
    d_mid = full_mlp // heads
    d_down = full_dim // heads

    x = jax.random.normal(ks[0], (rows, full_dim), dtype=jnp.float32)
    w_up = jax.random.normal(ks[1], (heads, d_in, d_mid), jnp.float32) * 0.1
    b_up = jax.random.normal(ks[2], (full_mlp,), jnp.float32) * 0.1
    w_down = jax.random.normal(ks[3], (heads, d_mid, d_down), jnp.float32) * 0.1
    b_down = jax.random.normal(ks[4], (full_dim,), jnp.float32) * 0.1

    ref = sparse_mlp_ref(x, w_up, b_up, w_down, b_down, heads=heads)

    # Exercise the auto policy plus forced group sizes so BOTH the per-head
    # path and the grouped ("paired") path are validated regardless of the
    # chip generation this runs on.
    for dg in (None, 1, 2, heads):
        out = jax.block_until_ready(
            sparse_mlp(x, w_up, b_up, w_down, b_down, heads=heads,
                       down_group=dg))
        assert out.shape == (rows, full_dim) and out.dtype == x.dtype
        err = float(jnp.max(jnp.abs(out - ref)))
        assert err < 1e-4, (dg, err)

    print("KERNEL_OK")
</pallas_src>

<mosaic_0001>
module attributes {stable_mosaic.version = 11 : i64} {
  func.func @_sparse_mlp_kernel(%arg0: i32, %arg1: memref<8x32xf32, #tpu.memory_space<vmem>>, %arg2: memref<4x8x32xf32, #tpu.memory_space<vmem>>, %arg3: memref<4x1x32xf32, #tpu.memory_space<vmem>>, %arg4: memref<4x32x8xf32, #tpu.memory_space<vmem>>, %arg5: memref<4x1x8xf32, #tpu.memory_space<vmem>>, %arg6: memref<8x32xf32, #tpu.memory_space<vmem>>) attributes {dimension_semantics = [#tpu.dimension_semantics<parallel>], iteration_bounds = array<i64: 2>, scalar_prefetch = 0 : i64, scratch_operands = 0 : i64, tpu.core_type = #tpu.core_type<tc>, window_params = [{transform_indices = @transform_0, window_bounds = array<i64: 8, 32>}, {pipeline_mode = #tpu.pipeline_mode<synchronous>, transform_indices = @transform_1, window_bounds = array<i64: 4, 8, 32>}, {pipeline_mode = #tpu.pipeline_mode<synchronous>, transform_indices = @transform_2, window_bounds = array<i64: 4, 1, 32>}, {pipeline_mode = #tpu.pipeline_mode<synchronous>, transform_indices = @transform_3, window_bounds = array<i64: 4, 32, 8>}, {pipeline_mode = #tpu.pipeline_mode<synchronous>, transform_indices = @transform_4, window_bounds = array<i64: 4, 1, 8>}, {transform_indices = @transform_5, window_bounds = array<i64: 8, 32>}]} {
    %c0 = arith.constant 0 : index
    %c0_0 = arith.constant 0 : index
    %0 = vector.load %arg1[%c0, %c0_0] : memref<8x32xf32, #tpu.memory_space<vmem>>, vector<8x32xf32>
    %1 = vector.extract_strided_slice %0 {offsets = [0, 0], sizes = [8, 8], strides = [1, 1]} : vector<8x32xf32> to vector<8x8xf32>
    %c0_1 = arith.constant 0 : index
    %c0_2 = arith.constant 0 : index
    %c0_3 = arith.constant 0 : index
    %2 = vector.load %arg2[%c0_1, %c0_2, %c0_3] : memref<4x8x32xf32, #tpu.memory_space<vmem>>, vector<1x8x32xf32>
    %3 = vector.shape_cast %2 : vector<1x8x32xf32> to vector<8x32xf32>
    %cst = arith.constant dense<0.000000e+00> : vector<8x32xf32>
    %4 = tpu.matmul %1, %3, %cst {dimension_numbers = #tpu.dot_dimension_numbers<[1], [0], [0], [1], [0, 0, 1, 1], [], []>} : vector<8x8xf32>, vector<8x32xf32>, vector<8x32xf32> -> vector<8x32xf32>
    %c0_4 = arith.constant 0 : index
    %c0_5 = arith.constant 0 : index
    %c0_6 = arith.constant 0 : index
    %5 = vector.load %arg3[%c0_4, %c0_5, %c0_6] : memref<4x1x32xf32, #tpu.memory_space<vmem>>, vector<1x1x32xf32>
    %6 = vector.shape_cast %5 : vector<1x1x32xf32> to vector<1x32xf32>
    %7 = vector.broadcast %6 : vector<1x32xf32> to vector<8x32xf32>
    %8 = arith.addf %4, %7 : vector<8x32xf32>
    %cst_7 = arith.constant 5.000000e-01 : f32
    %9 = vector.broadcast %cst_7 : f32 to vector<8x32xf32>
    %10 = arith.mulf %9, %8 : vector<8x32xf32>
    %cst_8 = arith.constant 4.471500e-02 : f32
    %11 = vector.broadcast %cst_8 : f32 to vector<8x32xf32>
    %12 = arith.mulf %11, %8 : vector<8x32xf32>
    %13 = arith.mulf %12, %8 : vector<8x32xf32>
    %14 = arith.mulf %13, %8 : vector<8x32xf32>
    %15 = arith.addf %8, %14 : vector<8x32xf32>
    %cst_9 = arith.constant 0.797884583 : f32
    %16 = vector.broadcast %cst_9 : f32 to vector<8x32xf32>
    %17 = arith.mulf %16, %15 : vector<8x32xf32>
    %18 = math.tanh %17 : vector<8x32xf32>
    %cst_10 = arith.constant 1.000000e+00 : f32
    %19 = vector.broadcast %cst_10 : f32 to vector<8x32xf32>
    %20 = arith.addf %19, %18 : vector<8x32xf32>
    %21 = arith.mulf %10, %20 : vector<8x32xf32>
    %22 = vector.extract_strided_slice %0 {offsets = [0, 8], sizes = [8, 8], strides = [1, 1]} : vector<8x32xf32> to vector<8x8xf32>
    %c1 = arith.constant 1 : index
    %c0_11 = arith.constant 0 : index
    %c0_12 = arith.constant 0 : index
    %23 = vector.load %arg2[%c1, %c0_11, %c0_12] : memref<4x8x32xf32, #tpu.memory_space<vmem>>, vector<1x8x32xf32>
    %24 = vector.shape_cast %23 : vector<1x8x32xf32> to vector<8x32xf32>
    %cst_13 = arith.constant dense<0.000000e+00> : vector<8x32xf32>
    %25 = tpu.matmul %22, %24, %cst_13 {dimension_numbers = #tpu.dot_dimension_numbers<[1], [0], [0], [1], [0, 0, 1, 1], [], []>} : vector<8x8xf32>, vector<8x32xf32>, vector<8x32xf32> -> vector<8x32xf32>
    %c1_14 = arith.constant 1 : index
    %c0_15 = arith.constant 0 : index
    %c0_16 = arith.constant 0 : index
    %26 = vector.load %arg3[%c1_14, %c0_15, %c0_16] : memref<4x1x32xf32, #tpu.memory_space<vmem>>, vector<1x1x32xf32>
    %27 = vector.shape_cast %26 : vector<1x1x32xf32> to vector<1x32xf32>
    %28 = vector.broadcast %27 : vector<1x32xf32> to vector<8x32xf32>
    %29 = arith.addf %25, %28 : vector<8x32xf32>
    %cst_17 = arith.constant 5.000000e-01 : f32
    %30 = vector.broadcast %cst_17 : f32 to vector<8x32xf32>
    %31 = arith.mulf %30, %29 : vector<8x32xf32>
    %cst_18 = arith.constant 4.471500e-02 : f32
    %32 = vector.broadcast %cst_18 : f32 to vector<8x32xf32>
    %33 = arith.mulf %32, %29 : vector<8x32xf32>
    %34 = arith.mulf %33, %29 : vector<8x32xf32>
    %35 = arith.mulf %34, %29 : vector<8x32xf32>
    %36 = arith.addf %29, %35 : vector<8x32xf32>
    %cst_19 = arith.constant 0.797884583 : f32
    %37 = vector.broadcast %cst_19 : f32 to vector<8x32xf32>
    %38 = arith.mulf %37, %36 : vector<8x32xf32>
    %39 = math.tanh %38 : vector<8x32xf32>
    %cst_20 = arith.constant 1.000000e+00 : f32
    %40 = vector.broadcast %cst_20 : f32 to vector<8x32xf32>
    %41 = arith.addf %40, %39 : vector<8x32xf32>
    %42 = arith.mulf %31, %41 : vector<8x32xf32>
    %43 = vector.extract_strided_slice %0 {offsets = [0, 16], sizes = [8, 8], strides = [1, 1]} : vector<8x32xf32> to vector<8x8xf32>
    %c2 = arith.constant 2 : index
    %c0_21 = arith.constant 0 : index
    %c0_22 = arith.constant 0 : index
    %44 = vector.load %arg2[%c2, %c0_21, %c0_22] : memref<4x8x32xf32, #tpu.memory_space<vmem>>, vector<1x8x32xf32>
    %45 = vector.shape_cast %44 : vector<1x8x32xf32> to vector<8x32xf32>
    %cst_23 = arith.constant dense<0.000000e+00> : vector<8x32xf32>
    %46 = tpu.matmul %43, %45, %cst_23 {dimension_numbers = #tpu.dot_dimension_numbers<[1], [0], [0], [1], [0, 0, 1, 1], [], []>} : vector<8x8xf32>, vector<8x32xf32>, vector<8x32xf32> -> vector<8x32xf32>
    %c2_24 = arith.constant 2 : index
    %c0_25 = arith.constant 0 : index
    %c0_26 = arith.constant 0 : index
    %47 = vector.load %arg3[%c2_24, %c0_25, %c0_26] : memref<4x1x32xf32, #tpu.memory_space<vmem>>, vector<1x1x32xf32>
    %48 = vector.shape_cast %47 : vector<1x1x32xf32> to vector<1x32xf32>
    %49 = vector.broadcast %48 : vector<1x32xf32> to vector<8x32xf32>
    %50 = arith.addf %46, %49 : vector<8x32xf32>
    %cst_27 = arith.constant 5.000000e-01 : f32
    %51 = vector.broadcast %cst_27 : f32 to vector<8x32xf32>
    %52 = arith.mulf %51, %50 : vector<8x32xf32>
    %cst_28 = arith.constant 4.471500e-02 : f32
    %53 = vector.broadcast %cst_28 : f32 to vector<8x32xf32>
    %54 = arith.mulf %53, %50 : vector<8x32xf32>
    %55 = arith.mulf %54, %50 : vector<8x32xf32>
    %56 = arith.mulf %55, %50 : vector<8x32xf32>
    %57 = arith.addf %50, %56 : vector<8x32xf32>
    %cst_29 = arith.constant 0.797884583 : f32
    %58 = vector.broadcast %cst_29 : f32 to vector<8x32xf32>
    %59 = arith.mulf %58, %57 : vector<8x32xf32>
    %60 = math.tanh %59 : vector<8x32xf32>
    %cst_30 = arith.constant 1.000000e+00 : f32
    %61 = vector.broadcast %cst_30 : f32 to vector<8x32xf32>
    %62 = arith.addf %61, %60 : vector<8x32xf32>
    %63 = arith.mulf %52, %62 : vector<8x32xf32>
    %64 = vector.extract_strided_slice %0 {offsets = [0, 24], sizes = [8, 8], strides = [1, 1]} : vector<8x32xf32> to vector<8x8xf32>
    %c3 = arith.constant 3 : index
    %c0_31 = arith.constant 0 : index
    %c0_32 = arith.constant 0 : index
    %65 = vector.load %arg2[%c3, %c0_31, %c0_32] : memref<4x8x32xf32, #tpu.memory_space<vmem>>, vector<1x8x32xf32>
    %66 = vector.shape_cast %65 : vector<1x8x32xf32> to vector<8x32xf32>
    %cst_33 = arith.constant dense<0.000000e+00> : vector<8x32xf32>
    %67 = tpu.matmul %64, %66, %cst_33 {dimension_numbers = #tpu.dot_dimension_numbers<[1], [0], [0], [1], [0, 0, 1, 1], [], []>} : vector<8x8xf32>, vector<8x32xf32>, vector<8x32xf32> -> vector<8x32xf32>
    %c3_34 = arith.constant 3 : index
    %c0_35 = arith.constant 0 : index
    %c0_36 = arith.constant 0 : index
    %68 = vector.load %arg3[%c3_34, %c0_35, %c0_36] : memref<4x1x32xf32, #tpu.memory_space<vmem>>, vector<1x1x32xf32>
    %69 = vector.shape_cast %68 : vector<1x1x32xf32> to vector<1x32xf32>
    %70 = vector.broadcast %69 : vector<1x32xf32> to vector<8x32xf32>
    %71 = arith.addf %67, %70 : vector<8x32xf32>
    %cst_37 = arith.constant 5.000000e-01 : f32
    %72 = vector.broadcast %cst_37 : f32 to vector<8x32xf32>
    %73 = arith.mulf %72, %71 : vector<8x32xf32>
    %cst_38 = arith.constant 4.471500e-02 : f32
    %74 = vector.broadcast %cst_38 : f32 to vector<8x32xf32>
    %75 = arith.mulf %74, %71 : vector<8x32xf32>
    %76 = arith.mulf %75, %71 : vector<8x32xf32>
    %77 = arith.mulf %76, %71 : vector<8x32xf32>
    %78 = arith.addf %71, %77 : vector<8x32xf32>
    %cst_39 = arith.constant 0.797884583 : f32
    %79 = vector.broadcast %cst_39 : f32 to vector<8x32xf32>
    %80 = arith.mulf %79, %78 : vector<8x32xf32>
    %81 = math.tanh %80 : vector<8x32xf32>
    %cst_40 = arith.constant 1.000000e+00 : f32
    %82 = vector.broadcast %cst_40 : f32 to vector<8x32xf32>
    %83 = arith.addf %82, %81 : vector<8x32xf32>
    %84 = arith.mulf %73, %83 : vector<8x32xf32>
    %85 = vector.extract_strided_slice %21 {offsets = [0, 0], sizes = [8, 8], strides = [1, 1]} : vector<8x32xf32> to vector<8x8xf32>
    %86 = vector.extract_strided_slice %42 {offsets = [0, 0], sizes = [8, 8], strides = [1, 1]} : vector<8x32xf32> to vector<8x8xf32>
    %87 = vector.extract_strided_slice %63 {offsets = [0, 0], sizes = [8, 8], strides = [1, 1]} : vector<8x32xf32> to vector<8x8xf32>
    %88 = vector.extract_strided_slice %84 {offsets = [0, 0], sizes = [8, 8], strides = [1, 1]} : vector<8x32xf32> to vector<8x8xf32>
    %89 = tpu.concatenate %85, %86, %87, %88 in 1 : vector<8x8xf32>, vector<8x8xf32>, vector<8x8xf32>, vector<8x8xf32> -> vector<8x32xf32>
    %c0_41 = arith.constant 0 : index
    %c0_42 = arith.constant 0 : index
    %c0_43 = arith.constant 0 : index
    %90 = vector.load %arg4[%c0_41, %c0_42, %c0_43] : memref<4x32x8xf32, #tpu.memory_space<vmem>>, vector<1x32x8xf32>
    %91 = vector.shape_cast %90 : vector<1x32x8xf32> to vector<32x8xf32>
    %cst_44 = arith.constant dense<0.000000e+00> : vector<8x8xf32>
    %92 = tpu.matmul %89, %91, %cst_44 {dimension_numbers = #tpu.dot_dimension_numbers<[1], [0], [0], [1], [0, 0, 1, 1], [], []>} : vector<8x32xf32>, vector<32x8xf32>, vector<8x8xf32> -> vector<8x8xf32>
    %c0_45 = arith.constant 0 : index
    %c0_46 = arith.constant 0 : index
    %c0_47 = arith.constant 0 : index
    %93 = vector.load %arg5[%c0_45, %c0_46, %c0_47] : memref<4x1x8xf32, #tpu.memory_space<vmem>>, vector<1x1x8xf32>
    %94 = vector.shape_cast %93 : vector<1x1x8xf32> to vector<1x8xf32>
    %95 = vector.broadcast %94 : vector<1x8xf32> to vector<8x8xf32>
    %96 = arith.addf %92, %95 : vector<8x8xf32>
    %97 = vector.extract_strided_slice %21 {offsets = [0, 8], sizes = [8, 8], strides = [1, 1]} : vector<8x32xf32> to vector<8x8xf32>
    %98 = vector.extract_strided_slice %42 {offsets = [0, 8], sizes = [8, 8], strides = [1, 1]} : vector<8x32xf32> to vector<8x8xf32>
    %99 = vector.extract_strided_slice %63 {offsets = [0, 8], sizes = [8, 8], strides = [1, 1]} : vector<8x32xf32> to vector<8x8xf32>
    %100 = vector.extract_strided_slice %84 {offsets = [0, 8], sizes = [8, 8], strides = [1, 1]} : vector<8x32xf32> to vector<8x8xf32>
    %101 = tpu.concatenate %97, %98, %99, %100 in 1 : vector<8x8xf32>, vector<8x8xf32>, vector<8x8xf32>, vector<8x8xf32> -> vector<8x32xf32>
    %c1_48 = arith.constant 1 : index
    %c0_49 = arith.constant 0 : index
    %c0_50 = arith.constant 0 : index
    %102 = vector.load %arg4[%c1_48, %c0_49, %c0_50] : memref<4x32x8xf32, #tpu.memory_space<vmem>>, vector<1x32x8xf32>
    %103 = vector.shape_cast %102 : vector<1x32x8xf32> to vector<32x8xf32>
    %cst_51 = arith.constant dense<0.000000e+00> : vector<8x8xf32>
    %104 = tpu.matmul %101, %103, %cst_51 {dimension_numbers = #tpu.dot_dimension_numbers<[1], [0], [0], [1], [0, 0, 1, 1], [], []>} : vector<8x32xf32>, vector<32x8xf32>, vector<8x8xf32> -> vector<8x8xf32>
    %c1_52 = arith.constant 1 : index
    %c0_53 = arith.constant 0 : index
    %c0_54 = arith.constant 0 : index
    %105 = vector.load %arg5[%c1_52, %c0_53, %c0_54] : memref<4x1x8xf32, #tpu.memory_space<vmem>>, vector<1x1x8xf32>
    %106 = vector.shape_cast %105 : vector<1x1x8xf32> to vector<1x8xf32>
    %107 = vector.broadcast %106 : vector<1x8xf32> to vector<8x8xf32>
    %108 = arith.addf %104, %107 : vector<8x8xf32>
    %109 = vector.extract_strided_slice %21 {offsets = [0, 16], sizes = [8, 8], strides = [1, 1]} : vector<8x32xf32> to vector<8x8xf32>
    %110 = vector.extract_strided_slice %42 {offsets = [0, 16], sizes = [8, 8], strides = [1, 1]} : vector<8x32xf32> to vector<8x8xf32>
    %111 = vector.extract_strided_slice %63 {offsets = [0, 16], sizes = [8, 8], strides = [1, 1]} : vector<8x32xf32> to vector<8x8xf32>
    %112 = vector.extract_strided_slice %84 {offsets = [0, 16], sizes = [8, 8], strides = [1, 1]} : vector<8x32xf32> to vector<8x8xf32>
    %113 = tpu.concatenate %109, %110, %111, %112 in 1 : vector<8x8xf32>, vector<8x8xf32>, vector<8x8xf32>, vector<8x8xf32> -> vector<8x32xf32>
    %c2_55 = arith.constant 2 : index
    %c0_56 = arith.constant 0 : index
    %c0_57 = arith.constant 0 : index
    %114 = vector.load %arg4[%c2_55, %c0_56, %c0_57] : memref<4x32x8xf32, #tpu.memory_space<vmem>>, vector<1x32x8xf32>
    %115 = vector.shape_cast %114 : vector<1x32x8xf32> to vector<32x8xf32>
    %cst_58 = arith.constant dense<0.000000e+00> : vector<8x8xf32>
    %116 = tpu.matmul %113, %115, %cst_58 {dimension_numbers = #tpu.dot_dimension_numbers<[1], [0], [0], [1], [0, 0, 1, 1], [], []>} : vector<8x32xf32>, vector<32x8xf32>, vector<8x8xf32> -> vector<8x8xf32>
    %c2_59 = arith.constant 2 : index
    %c0_60 = arith.constant 0 : index
    %c0_61 = arith.constant 0 : index
    %117 = vector.load %arg5[%c2_59, %c0_60, %c0_61] : memref<4x1x8xf32, #tpu.memory_space<vmem>>, vector<1x1x8xf32>
    %118 = vector.shape_cast %117 : vector<1x1x8xf32> to vector<1x8xf32>
    %119 = vector.broadcast %118 : vector<1x8xf32> to vector<8x8xf32>
    %120 = arith.addf %116, %119 : vector<8x8xf32>
    %121 = vector.extract_strided_slice %21 {offsets = [0, 24], sizes = [8, 8], strides = [1, 1]} : vector<8x32xf32> to vector<8x8xf32>
    %122 = vector.extract_strided_slice %42 {offsets = [0, 24], sizes = [8, 8], strides = [1, 1]} : vector<8x32xf32> to vector<8x8xf32>
    %123 = vector.extract_strided_slice %63 {offsets = [0, 24], sizes = [8, 8], strides = [1, 1]} : vector<8x32xf32> to vector<8x8xf32>
    %124 = vector.extract_strided_slice %84 {offsets = [0, 24], sizes = [8, 8], strides = [1, 1]} : vector<8x32xf32> to vector<8x8xf32>
    %125 = tpu.concatenate %121, %122, %123, %124 in 1 : vector<8x8xf32>, vector<8x8xf32>, vector<8x8xf32>, vector<8x8xf32> -> vector<8x32xf32>
    %c3_62 = arith.constant 3 : index
    %c0_63 = arith.constant 0 : index
    %c0_64 = arith.constant 0 : index
    %126 = vector.load %arg4[%c3_62, %c0_63, %c0_64] : memref<4x32x8xf32, #tpu.memory_space<vmem>>, vector<1x32x8xf32>
    %127 = vector.shape_cast %126 : vector<1x32x8xf32> to vector<32x8xf32>
    %cst_65 = arith.constant dense<0.000000e+00> : vector<8x8xf32>
    %128 = tpu.matmul %125, %127, %cst_65 {dimension_numbers = #tpu.dot_dimension_numbers<[1], [0], [0], [1], [0, 0, 1, 1], [], []>} : vector<8x32xf32>, vector<32x8xf32>, vector<8x8xf32> -> vector<8x8xf32>
    %c3_66 = arith.constant 3 : index
    %c0_67 = arith.constant 0 : index
    %c0_68 = arith.constant 0 : index
    %129 = vector.load %arg5[%c3_66, %c0_67, %c0_68] : memref<4x1x8xf32, #tpu.memory_space<vmem>>, vector<1x1x8xf32>
    %130 = vector.shape_cast %129 : vector<1x1x8xf32> to vector<1x8xf32>
    %131 = vector.broadcast %130 : vector<1x8xf32> to vector<8x8xf32>
    %132 = arith.addf %128, %131 : vector<8x8xf32>
    %133 = tpu.concatenate %96, %108, %120, %132 in 1 : vector<8x8xf32>, vector<8x8xf32>, vector<8x8xf32>, vector<8x8xf32> -> vector<8x32xf32>
    %c0_69 = arith.constant 0 : index
    %c0_70 = arith.constant 0 : index
    %134 = vector.load %arg6[%c0_69, %c0_70] : memref<8x32xf32, #tpu.memory_space<vmem>>, vector<8x32xf32>
    tpu.vector_store %arg6[%c0_69, %c0_70], %133 {strides = array<i32>} : memref<8x32xf32, #tpu.memory_space<vmem>>, vector<8x32xf32>,
    return
  }
  func.func @transform_0(%arg0: i32) -> (i32, i32) {
    %c0_i32 = arith.constant 0 : i32
    %c0_i32_0 = arith.constant 0 : i32
    return %arg0, %c0_i32 : i32, i32
  }
  func.func @transform_1(%arg0: i32) -> (i32, i32, i32) {
    %c0_i32 = arith.constant 0 : i32
    %c0_i32_0 = arith.constant 0 : i32
    %c0_i32_1 = arith.constant 0 : i32
    %c0_i32_2 = arith.constant 0 : i32
    return %c0_i32, %c0_i32_0, %c0_i32_1 : i32, i32, i32
  }
  func.func @transform_2(%arg0: i32) -> (i32, i32, i32) {
    %c0_i32 = arith.constant 0 : i32
    %c0_i32_0 = arith.constant 0 : i32
    %c0_i32_1 = arith.constant 0 : i32
    %c0_i32_2 = arith.constant 0 : i32
    return %c0_i32, %c0_i32_0, %c0_i32_1 : i32, i32, i32
  }
  func.func @transform_3(%arg0: i32) -> (i32, i32, i32) {
    %c0_i32 = arith.constant 0 : i32
    %c0_i32_0 = arith.constant 0 : i32
    %c0_i32_1 = arith.constant 0 : i32
    %c0_i32_2 = arith.constant 0 : i32
    return %c0_i32, %c0_i32_0, %c0_i32_1 : i32, i32, i32
  }
  func.func @transform_4(%arg0: i32) -> (i32, i32, i32) {
    %c0_i32 = arith.constant 0 : i32
    %c0_i32_0 = arith.constant 0 : i32
    %c0_i32_1 = arith.constant 0 : i32
    %c0_i32_2 = arith.constant 0 : i32
    return %c0_i32, %c0_i32_0, %c0_i32_1 : i32, i32, i32
  }
  func.func @transform_5(%arg0: i32) -> (i32, i32) {
    %c0_i32 = arith.constant 0 : i32
    %c0_i32_0 = arith.constant 0 : i32
    return %arg0, %c0_i32 : i32, i32
  }
}

module attributes {stable_mosaic.version = 11 : i64} {
  func.func @_sparse_mlp_kernel(%arg0: i32, %arg1: memref<8x32xf32, #tpu.memory_space<vmem>>, %arg2: memref<4x8x32xf32, #tpu.memory_space<vmem>>, %arg3: memref<4x1x32xf32, #tpu.memory_space<vmem>>, %arg4: memref<4x32x8xf32, #tpu.memory_space<vmem>>, %arg5: memref<4x1x8xf32, #tpu.memory_space<vmem>>, %arg6: memref<8x32xf32, #tpu.memory_space<vmem>>) attributes {dimension_semantics = [#tpu.dimension_semantics<parallel>], iteration_bounds = array<i64: 2>, scalar_prefetch = 0 : i64, scratch_operands = 0 : i64, tpu.core_type = #tpu.core_type<tc>, window_params = [{transform_indices = @transform_0, window_bounds = array<i64: 8, 32>}, {pipeline_mode = #tpu.pipeline_mode<synchronous>, transform_indices = @transform_1, window_bounds = array<i64: 4, 8, 32>}, {pipeline_mode = #tpu.pipeline_mode<synchronous>, transform_indices = @transform_2, window_bounds = array<i64: 4, 1, 32>}, {pipeline_mode = #tpu.pipeline_mode<synchronous>, transform_indices = @transform_3, window_bounds = array<i64: 4, 32, 8>}, {pipeline_mode = #tpu.pipeline_mode<synchronous>, transform_indices = @transform_4, window_bounds = array<i64: 4, 1, 8>}, {transform_indices = @transform_5, window_bounds = array<i64: 8, 32>}]} {
    %c0 = arith.constant 0 : index
    %c0_0 = arith.constant 0 : index
    %0 = vector.load %arg1[%c0, %c0_0] : memref<8x32xf32, #tpu.memory_space<vmem>>, vector<8x32xf32>
    %1 = vector.extract_strided_slice %0 {offsets = [0, 0], sizes = [8, 8], strides = [1, 1]} : vector<8x32xf32> to vector<8x8xf32>
    %c0_1 = arith.constant 0 : index
    %c0_2 = arith.constant 0 : index
    %c0_3 = arith.constant 0 : index
    %2 = vector.load %arg2[%c0_1, %c0_2, %c0_3] : memref<4x8x32xf32, #tpu.memory_space<vmem>>, vector<1x8x32xf32>
    %3 = vector.shape_cast %2 : vector<1x8x32xf32> to vector<8x32xf32>
    %cst = arith.constant dense<0.000000e+00> : vector<8x32xf32>
    %4 = tpu.matmul %1, %3, %cst {dimension_numbers = #tpu.dot_dimension_numbers<[1], [0], [0], [1], [0, 0, 1, 1], [], []>} : vector<8x8xf32>, vector<8x32xf32>, vector<8x32xf32> -> vector<8x32xf32>
    %c0_4 = arith.constant 0 : index
    %c0_5 = arith.constant 0 : index
    %c0_6 = arith.constant 0 : index
    %5 = vector.load %arg3[%c0_4, %c0_5, %c0_6] : memref<4x1x32xf32, #tpu.memory_space<vmem>>, vector<1x1x32xf32>
    %6 = vector.shape_cast %5 : vector<1x1x32xf32> to vector<1x32xf32>
    %7 = vector.broadcast %6 : vector<1x32xf32> to vector<8x32xf32>
    %8 = arith.addf %4, %7 : vector<8x32xf32>
    %cst_7 = arith.constant 5.000000e-01 : f32
    %9 = vector.broadcast %cst_7 : f32 to vector<8x32xf32>
    %10 = arith.mulf %9, %8 : vector<8x32xf32>
    %cst_8 = arith.constant 4.471500e-02 : f32
    %11 = vector.broadcast %cst_8 : f32 to vector<8x32xf32>
    %12 = arith.mulf %11, %8 : vector<8x32xf32>
    %13 = arith.mulf %12, %8 : vector<8x32xf32>
    %14 = arith.mulf %13, %8 : vector<8x32xf32>
    %15 = arith.addf %8, %14 : vector<8x32xf32>
    %cst_9 = arith.constant 0.797884583 : f32
    %16 = vector.broadcast %cst_9 : f32 to vector<8x32xf32>
    %17 = arith.mulf %16, %15 : vector<8x32xf32>
    %18 = math.tanh %17 : vector<8x32xf32>
    %cst_10 = arith.constant 1.000000e+00 : f32
    %19 = vector.broadcast %cst_10 : f32 to vector<8x32xf32>
    %20 = arith.addf %19, %18 : vector<8x32xf32>
    %21 = arith.mulf %10, %20 : vector<8x32xf32>
    %22 = vector.extract_strided_slice %0 {offsets = [0, 8], sizes = [8, 8], strides = [1, 1]} : vector<8x32xf32> to vector<8x8xf32>
    %c1 = arith.constant 1 : index
    %c0_11 = arith.constant 0 : index
    %c0_12 = arith.constant 0 : index
    %23 = vector.load %arg2[%c1, %c0_11, %c0_12] : memref<4x8x32xf32, #tpu.memory_space<vmem>>, vector<1x8x32xf32>
    %24 = vector.shape_cast %23 : vector<1x8x32xf32> to vector<8x32xf32>
    %cst_13 = arith.constant dense<0.000000e+00> : vector<8x32xf32>
    %25 = tpu.matmul %22, %24, %cst_13 {dimension_numbers = #tpu.dot_dimension_numbers<[1], [0], [0], [1], [0, 0, 1, 1], [], []>} : vector<8x8xf32>, vector<8x32xf32>, vector<8x32xf32> -> vector<8x32xf32>
    %c1_14 = arith.constant 1 : index
    %c0_15 = arith.constant 0 : index
    %c0_16 = arith.constant 0 : index
    %26 = vector.load %arg3[%c1_14, %c0_15, %c0_16] : memref<4x1x32xf32, #tpu.memory_space<vmem>>, vector<1x1x32xf32>
    %27 = vector.shape_cast %26 : vector<1x1x32xf32> to vector<1x32xf32>
    %28 = vector.broadcast %27 : vector<1x32xf32> to vector<8x32xf32>
    %29 = arith.addf %25, %28 : vector<8x32xf32>
    %cst_17 = arith.constant 5.000000e-01 : f32
    %30 = vector.broadcast %cst_17 : f32 to vector<8x32xf32>
    %31 = arith.mulf %30, %29 : vector<8x32xf32>
    %cst_18 = arith.constant 4.471500e-02 : f32
    %32 = vector.broadcast %cst_18 : f32 to vector<8x32xf32>
    %33 = arith.mulf %32, %29 : vector<8x32xf32>
    %34 = arith.mulf %33, %29 : vector<8x32xf32>
    %35 = arith.mulf %34, %29 : vector<8x32xf32>
    %36 = arith.addf %29, %35 : vector<8x32xf32>
    %cst_19 = arith.constant 0.797884583 : f32
    %37 = vector.broadcast %cst_19 : f32 to vector<8x32xf32>
    %38 = arith.mulf %37, %36 : vector<8x32xf32>
    %39 = math.tanh %38 : vector<8x32xf32>
    %cst_20 = arith.constant 1.000000e+00 : f32
    %40 = vector.broadcast %cst_20 : f32 to vector<8x32xf32>
    %41 = arith.addf %40, %39 : vector<8x32xf32>
    %42 = arith.mulf %31, %41 : vector<8x32xf32>
    %43 = vector.extract_strided_slice %0 {offsets = [0, 16], sizes = [8, 8], strides = [1, 1]} : vector<8x32xf32> to vector<8x8xf32>
    %c2 = arith.constant 2 : index
    %c0_21 = arith.constant 0 : index
    %c0_22 = arith.constant 0 : index
    %44 = vector.load %arg2[%c2, %c0_21, %c0_22] : memref<4x8x32xf32, #tpu.memory_space<vmem>>, vector<1x8x32xf32>
    %45 = vector.shape_cast %44 : vector<1x8x32xf32> to vector<8x32xf32>
    %cst_23 = arith.constant dense<0.000000e+00> : vector<8x32xf32>
    %46 = tpu.matmul %43, %45, %cst_23 {dimension_numbers = #tpu.dot_dimension_numbers<[1], [0], [0], [1], [0, 0, 1, 1], [], []>} : vector<8x8xf32>, vector<8x32xf32>, vector<8x32xf32> -> vector<8x32xf32>
    %c2_24 = arith.constant 2 : index
    %c0_25 = arith.constant 0 : index
    %c0_26 = arith.constant 0 : index
    %47 = vector.load %arg3[%c2_24, %c0_25, %c0_26] : memref<4x1x32xf32, #tpu.memory_space<vmem>>, vector<1x1x32xf32>
    %48 = vector.shape_cast %47 : vector<1x1x32xf32> to vector<1x32xf32>
    %49 = vector.broadcast %48 : vector<1x32xf32> to vector<8x32xf32>
    %50 = arith.addf %46, %49 : vector<8x32xf32>
    %cst_27 = arith.constant 5.000000e-01 : f32
    %51 = vector.broadcast %cst_27 : f32 to vector<8x32xf32>
    %52 = arith.mulf %51, %50 : vector<8x32xf32>
    %cst_28 = arith.constant 4.471500e-02 : f32
    %53 = vector.broadcast %cst_28 : f32 to vector<8x32xf32>
    %54 = arith.mulf %53, %50 : vector<8x32xf32>
    %55 = arith.mulf %54, %50 : vector<8x32xf32>
    %56 = arith.mulf %55, %50 : vector<8x32xf32>
    %57 = arith.addf %50, %56 : vector<8x32xf32>
    %cst_29 = arith.constant 0.797884583 : f32
    %58 = vector.broadcast %cst_29 : f32 to vector<8x32xf32>
    %59 = arith.mulf %58, %57 : vector<8x32xf32>
    %60 = math.tanh %59 : vector<8x32xf32>
    %cst_30 = arith.constant 1.000000e+00 : f32
    %61 = vector.broadcast %cst_30 : f32 to vector<8x32xf32>
    %62 = arith.addf %61, %60 : vector<8x32xf32>
    %63 = arith.mulf %52, %62 : vector<8x32xf32>
    %64 = vector.extract_strided_slice %0 {offsets = [0, 24], sizes = [8, 8], strides = [1, 1]} : vector<8x32xf32> to vector<8x8xf32>
    %c3 = arith.constant 3 : index
    %c0_31 = arith.constant 0 : index
    %c0_32 = arith.constant 0 : index
    %65 = vector.load %arg2[%c3, %c0_31, %c0_32] : memref<4x8x32xf32, #tpu.memory_space<vmem>>, vector<1x8x32xf32>
    %66 = vector.shape_cast %65 : vector<1x8x32xf32> to vector<8x32xf32>
    %cst_33 = arith.constant dense<0.000000e+00> : vector<8x32xf32>
    %67 = tpu.matmul %64, %66, %cst_33 {dimension_numbers = #tpu.dot_dimension_numbers<[1], [0], [0], [1], [0, 0, 1, 1], [], []>} : vector<8x8xf32>, vector<8x32xf32>, vector<8x32xf32> -> vector<8x32xf32>
    %c3_34 = arith.constant 3 : index
    %c0_35 = arith.constant 0 : index
    %c0_36 = arith.constant 0 : index
    %68 = vector.load %arg3[%c3_34, %c0_35, %c0_36] : memref<4x1x32xf32, #tpu.memory_space<vmem>>, vector<1x1x32xf32>
    %69 = vector.shape_cast %68 : vector<1x1x32xf32> to vector<1x32xf32>
    %70 = vector.broadcast %69 : vector<1x32xf32> to vector<8x32xf32>
    %71 = arith.addf %67, %70 : vector<8x32xf32>
    %cst_37 = arith.constant 5.000000e-01 : f32
    %72 = vector.broadcast %cst_37 : f32 to vector<8x32xf32>
    %73 = arith.mulf %72, %71 : vector<8x32xf32>
    %cst_38 = arith.constant 4.471500e-02 : f32
    %74 = vector.broadcast %cst_38 : f32 to vector<8x32xf32>
    %75 = arith.mulf %74, %71 : vector<8x32xf32>
    %76 = arith.mulf %75, %71 : vector<8x32xf32>
    %77 = arith.mulf %76, %71 : vector<8x32xf32>
    %78 = arith.addf %71, %77 : vector<8x32xf32>
    %cst_39 = arith.constant 0.797884583 : f32
    %79 = vector.broadcast %cst_39 : f32 to vector<8x32xf32>
    %80 = arith.mulf %79, %78 : vector<8x32xf32>
    %81 = math.tanh %80 : vector<8x32xf32>
    %cst_40 = arith.constant 1.000000e+00 : f32
    %82 = vector.broadcast %cst_40 : f32 to vector<8x32xf32>
    %83 = arith.addf %82, %81 : vector<8x32xf32>
    %84 = arith.mulf %73, %83 : vector<8x32xf32>
    %85 = vector.extract_strided_slice %21 {offsets = [0, 0], sizes = [8, 8], strides = [1, 1]} : vector<8x32xf32> to vector<8x8xf32>
    %86 = vector.extract_strided_slice %42 {offsets = [0, 0], sizes = [8, 8], strides = [1, 1]} : vector<8x32xf32> to vector<8x8xf32>
    %87 = vector.extract_strided_slice %63 {offsets = [0, 0], sizes = [8, 8], strides = [1, 1]} : vector<8x32xf32> to vector<8x8xf32>
    %88 = vector.extract_strided_slice %84 {offsets = [0, 0], sizes = [8, 8], strides = [1, 1]} : vector<8x32xf32> to vector<8x8xf32>
    %89 = tpu.concatenate %85, %86, %87, %88 in 1 : vector<8x8xf32>, vector<8x8xf32>, vector<8x8xf32>, vector<8x8xf32> -> vector<8x32xf32>
    %c0_41 = arith.constant 0 : index
    %c0_42 = arith.constant 0 : index
    %c0_43 = arith.constant 0 : index
    %90 = vector.load %arg4[%c0_41, %c0_42, %c0_43] : memref<4x32x8xf32, #tpu.memory_space<vmem>>, vector<1x32x8xf32>
    %91 = vector.shape_cast %90 : vector<1x32x8xf32> to vector<32x8xf32>
    %cst_44 = arith.constant dense<0.000000e+00> : vector<8x8xf32>
    %92 = tpu.matmul %89, %91, %cst_44 {dimension_numbers = #tpu.dot_dimension_numbers<[1], [0], [0], [1], [0, 0, 1, 1], [], []>} : vector<8x32xf32>, vector<32x8xf32>, vector<8x8xf32> -> vector<8x8xf32>
    %c0_45 = arith.constant 0 : index
    %c0_46 = arith.constant 0 : index
    %c0_47 = arith.constant 0 : index
    %93 = vector.load %arg5[%c0_45, %c0_46, %c0_47] : memref<4x1x8xf32, #tpu.memory_space<vmem>>, vector<1x1x8xf32>
    %94 = vector.shape_cast %93 : vector<1x1x8xf32> to vector<1x8xf32>
    %95 = vector.broadcast %94 : vector<1x8xf32> to vector<8x8xf32>
    %96 = arith.addf %92, %95 : vector<8x8xf32>
    %97 = vector.extract_strided_slice %21 {offsets = [0, 8], sizes = [8, 8], strides = [1, 1]} : vector<8x32xf32> to vector<8x8xf32>
    %98 = vector.extract_strided_slice %42 {offsets = [0, 8], sizes = [8, 8], strides = [1, 1]} : vector<8x32xf32> to vector<8x8xf32>
    %99 = vector.extract_strided_slice %63 {offsets = [0, 8], sizes = [8, 8], strides = [1, 1]} : vector<8x32xf32> to vector<8x8xf32>
    %100 = vector.extract_strided_slice %84 {offsets = [0, 8], sizes = [8, 8], strides = [1, 1]} : vector<8x32xf32> to vector<8x8xf32>
    %101 = tpu.concatenate %97, %98, %99, %100 in 1 : vector<8x8xf32>, vector<8x8xf32>, vector<8x8xf32>, vector<8x8xf32> -> vector<8x32xf32>
    %c1_48 = arith.constant 1 : index
    %c0_49 = arith.constant 0 : index
    %c0_50 = arith.constant 0 : index
    %102 = vector.load %arg4[%c1_48, %c0_49, %c0_50] : memref<4x32x8xf32, #tpu.memory_space<vmem>>, vector<1x32x8xf32>
    %103 = vector.shape_cast %102 : vector<1x32x8xf32> to vector<32x8xf32>
    %cst_51 = arith.constant dense<0.000000e+00> : vector<8x8xf32>
    %104 = tpu.matmul %101, %103, %cst_51 {dimension_numbers = #tpu.dot_dimension_numbers<[1], [0], [0], [1], [0, 0, 1, 1], [], []>} : vector<8x32xf32>, vector<32x8xf32>, vector<8x8xf32> -> vector<8x8xf32>
    %c1_52 = arith.constant 1 : index
    %c0_53 = arith.constant 0 : index
    %c0_54 = arith.constant 0 : index
    %105 = vector.load %arg5[%c1_52, %c0_53, %c0_54] : memref<4x1x8xf32, #tpu.memory_space<vmem>>, vector<1x1x8xf32>
    %106 = vector.shape_cast %105 : vector<1x1x8xf32> to vector<1x8xf32>
    %107 = vector.broadcast %106 : vector<1x8xf32> to vector<8x8xf32>
    %108 = arith.addf %104, %107 : vector<8x8xf32>
    %109 = vector.extract_strided_slice %21 {offsets = [0, 16], sizes = [8, 8], strides = [1, 1]} : vector<8x32xf32> to vector<8x8xf32>
    %110 = vector.extract_strided_slice %42 {offsets = [0, 16], sizes = [8, 8], strides = [1, 1]} : vector<8x32xf32> to vector<8x8xf32>
    %111 = vector.extract_strided_slice %63 {offsets = [0, 16], sizes = [8, 8], strides = [1, 1]} : vector<8x32xf32> to vector<8x8xf32>
    %112 = vector.extract_strided_slice %84 {offsets = [0, 16], sizes = [8, 8], strides = [1, 1]} : vector<8x32xf32> to vector<8x8xf32>
    %113 = tpu.concatenate %109, %110, %111, %112 in 1 : vector<8x8xf32>, vector<8x8xf32>, vector<8x8xf32>, vector<8x8xf32> -> vector<8x32xf32>
    %c2_55 = arith.constant 2 : index
    %c0_56 = arith.constant 0 : index
    %c0_57 = arith.constant 0 : index
    %114 = vector.load %arg4[%c2_55, %c0_56, %c0_57] : memref<4x32x8xf32, #tpu.memory_space<vmem>>, vector<1x32x8xf32>
    %115 = vector.shape_cast %114 : vector<1x32x8xf32> to vector<32x8xf32>
    %cst_58 = arith.constant dense<0.000000e+00> : vector<8x8xf32>
    %116 = tpu.matmul %113, %115, %cst_58 {dimension_numbers = #tpu.dot_dimension_numbers<[1], [0], [0], [1], [0, 0, 1, 1], [], []>} : vector<8x32xf32>, vector<32x8xf32>, vector<8x8xf32> -> vector<8x8xf32>
    %c2_59 = arith.constant 2 : index
    %c0_60 = arith.constant 0 : index
    %c0_61 = arith.constant 0 : index
    %117 = vector.load %arg5[%c2_59, %c0_60, %c0_61] : memref<4x1x8xf32, #tpu.memory_space<vmem>>, vector<1x1x8xf32>
    %118 = vector.shape_cast %117 : vector<1x1x8xf32> to vector<1x8xf32>
    %119 = vector.broadcast %118 : vector<1x8xf32> to vector<8x8xf32>
    %120 = arith.addf %116, %119 : vector<8x8xf32>
    %121 = vector.extract_strided_slice %21 {offsets = [0, 24], sizes = [8, 8], strides = [1, 1]} : vector<8x32xf32> to vector<8x8xf32>
    %122 = vector.extract_strided_slice %42 {offsets = [0, 24], sizes = [8, 8], strides = [1, 1]} : vector<8x32xf32> to vector<8x8xf32>
    %123 = vector.extract_strided_slice %63 {offsets = [0, 24], sizes = [8, 8], strides = [1, 1]} : vector<8x32xf32> to vector<8x8xf32>
    %124 = vector.extract_strided_slice %84 {offsets = [0, 24], sizes = [8, 8], strides = [1, 1]} : vector<8x32xf32> to vector<8x8xf32>
    %125 = tpu.concatenate %121, %122, %123, %124 in 1 : vector<8x8xf32>, vector<8x8xf32>, vector<8x8xf32>, vector<8x8xf32> -> vector<8x32xf32>
    %c3_62 = arith.constant 3 : index
    %c0_63 = arith.constant 0 : index
    %c0_64 = arith.constant 0 : index
    %126 = vector.load %arg4[%c3_62, %c0_63, %c0_64] : memref<4x32x8xf32, #tpu.memory_space<vmem>>, vector<1x32x8xf32>
    %127 = vector.shape_cast %126 : vector<1x32x8xf32> to vector<32x8xf32>
    %cst_65 = arith.constant dense<0.000000e+00> : vector<8x8xf32>
    %128 = tpu.matmul %125, %127, %cst_65 {dimension_numbers = #tpu.dot_dimension_numbers<[1], [0], [0], [1], [0, 0, 1, 1], [], []>} : vector<8x32xf32>, vector<32x8xf32>, vector<8x8xf32> -> vector<8x8xf32>
    %c3_66 = arith.constant 3 : index
    %c0_67 = arith.constant 0 : index
    %c0_68 = arith.constant 0 : index
    %129 = vector.load %arg5[%c3_66, %c0_67, %c0_68] : memref<4x1x8xf32, #tpu.memory_space<vmem>>, vector<1x1x8xf32>
    %130 = vector.shape_cast %129 : vector<1x1x8xf32> to vector<1x8xf32>
    %131 = vector.broadcast %130 : vector<1x8xf32> to vector<8x8xf32>
    %132 = arith.addf %128, %131 : vector<8x8xf32>
    %133 = tpu.concatenate %96, %108, %120, %132 in 1 : vector<8x8xf32>, vector<8x8xf32>, vector<8x8xf32>, vector<8x8xf32> -> vector<8x32xf32>
    %c0_69 = arith.constant 0 : index
    %c0_70 = arith.constant 0 : index
    %134 = vector.load %arg6[%c0_69, %c0_70] : memref<8x32xf32, #tpu.memory_space<vmem>>, vector<8x32xf32>
    tpu.vector_store %arg6[%c0_69, %c0_70], %133 {strides = array<i32>} : memref<8x32xf32, #tpu.memory_space<vmem>>, vector<8x32xf32>,
    return
  }
  func.func @transform_0(%arg0: i32) -> (i32, i32) {
    %c0_i32 = arith.constant 0 : i32
    %c0_i32_0 = arith.constant 0 : i32
    return %arg0, %c0_i32 : i32, i32
  }
  func.func @transform_1(%arg0: i32) -> (i32, i32, i32) {
    %c0_i32 = arith.constant 0 : i32
    %c0_i32_0 = arith.constant 0 : i32
    %c0_i32_1 = arith.constant 0 : i32
    %c0_i32_2 = arith.constant 0 : i32
    return %c0_i32, %c0_i32_0, %c0_i32_1 : i32, i32, i32
  }
  func.func @transform_2(%arg0: i32) -> (i32, i32, i32) {
    %c0_i32 = arith.constant 0 : i32
    %c0_i32_0 = arith.constant 0 : i32
    %c0_i32_1 = arith.constant 0 : i32
    %c0_i32_2 = arith.constant 0 : i32
    return %c0_i32, %c0_i32_0, %c0_i32_1 : i32, i32, i32
  }
  func.func @transform_3(%arg0: i32) -> (i32, i32, i32) {
    %c0_i32 = arith.constant 0 : i32
    %c0_i32_0 = arith.constant 0 : i32
    %c0_i32_1 = arith.constant 0 : i32
    %c0_i32_2 = arith.constant 0 : i32
    return %c0_i32, %c0_i32_0, %c0_i32_1 : i32, i32, i32
  }
  func.func @transform_4(%arg0: i32) -> (i32, i32, i32) {
    %c0_i32 = arith.constant 0 : i32
    %c0_i32_0 = arith.constant 0 : i32
    %c0_i32_1 = arith.constant 0 : i32
    %c0_i32_2 = arith.constant 0 : i32
    return %c0_i32, %c0_i32_0, %c0_i32_1 : i32, i32, i32
  }
  func.func @transform_5(%arg0: i32) -> (i32, i32) {
    %c0_i32 = arith.constant 0 : i32
    %c0_i32_0 = arith.constant 0 : i32
    return %arg0, %c0_i32 : i32, i32
  }
}

</mosaic_0001>

<llo_original>
// kernel: tpu_custom_call.1
$region0: #{tpu_custom_call.1}
  #allocation0 [shape = 'u32[]', space=smem, size = 0x4, offset = 0x4, fixed_abs, tag = 'smem constant byte address 0x4 - core index']
  #allocation1 [shape = 'u32[144,128]{1,0:T(1,128)}', space=vmem, size = 0x12000, scoped, tag = 'internal scratch']
  %s0 = inlined_call_operand.vmem [shape: f32[16,32], index: 0, kind: input, shape index: {}]
  %s1 = inlined_call_operand.vmem [shape: f32[4,8,32], index: 1, kind: input, shape index: {}]
  %s2 = inlined_call_operand.vmem [shape: f32[4,1,32], index: 2, kind: input, shape index: {}]
  %s3 = inlined_call_operand.vmem [shape: f32[4,32,8], index: 3, kind: input, shape index: {}]
  %s4 = inlined_call_operand.vmem [shape: f32[4,1,8], index: 4, kind: input, shape index: {}]
  %s5 = inlined_call_operand.hbm [shape: f32[16,32], index: 5, kind: output, shape index: {}]
  %s6 = sld [smem:[#allocation0]]
  $region53: #{tpu_custom_call.1} parent=0
    _
  %s8 = ssub.s32 1, %s6
  %s9 = scalar_select 0, %s8, %s6
  $region1: #{tpu_custom_call.1} parent=0
    #allocation2 [shape = 'u8[8192]{0}', space=vmem, size = 0x2000, scoped, tag = 'output window, operand 0']
    #allocation3 [shape = 's32[2]{0}', space=sflag, size = 0x8, scoped, tag = 'scoped memory for tpu_custom_call.1']
    %10 = vsyncpa [#allocation3], 0
    %s11 = scalar_lea.sflag [#allocation3], 1
    %12 = vsyncpa %s11, 0
    loop: start=0, step=1, limit=4
    $region2: #{tpu_custom_call.1} parent=1 // loop_pre_header
      _
    $region3: #{tpu_custom_call.1} parent=1 // loop_header
      %s14 = sphi 0, %s18
      %p15 = scmp.ge.s32.totalorder %s14, 4
      %s24 = sphi 0, %s26
      %s27 = sphi 0, %s24
      %s28 = sphi 0, %s27
      %s44 = sphi 0, %s28
      %s48 = sphi 0, %s48
      %s50 = sphi 0, %s48
      %s51 = sphi 0, %s50
      %s65 = sphi 0, %s51
      %s69 = sphi 0, %s69
      %s71 = sphi 0, %s69
      %s72 = sphi 0, %s71
      %s86 = sphi 0, %s72
      %s90 = sphi 0, %s90
      %s92 = sphi 0, %s90
      %s93 = sphi 0, %s92
      %s107 = sphi 0, %s93
      %s111 = sphi 0, %s111
      %s113 = sphi 0, %s111
      %s114 = sphi 0, %s113
      %s128 = sphi 0, %s114
      %s134 = sphi 0, %s136
      %s137 = sphi 0, %s134
      %s138 = sphi 0, %s137
      %s154 = sphi 0, %s138
    $region4: #{tpu_custom_call.1} parent=1 // loop_header_branch
      %17 = sbr.rel (%p15) target = $region8
    $region5: #{tpu_custom_call.1} parent=1 // loop_body
      %s19 = ssub.s32 %s14, 1
      %s20 = ssub.s32 %s14, 2
      %s21 = sadd.s32 %s14, 1
      %s22 = ssub.s32 %s14, %s21
      %p23 = scmp.eq.s32.totalorder %s22, 0
      %s25 = sadd.s32 %s24, 1
      %s26 = scalar_select %p23, %s24, %s25
      %p29 = pneg %p23
      %p30 = scmp.eq.s32.totalorder %s14, 1
      %p31 = por %p29, %p30
      %p32 = scmp.ne.s32.totalorder %s24, %s27
      %p33 = scmp.eq.s32.totalorder %s14, 0
      %p34 = por %p32, %p33
      %p35 = scmp.ne.s32.totalorder %s24, %s27
      %p36 = scmp.eq.s32.totalorder %s19, 1
      %p37 = por %p35, %p36
      %p38 = scmp.ne.s32.totalorder %s27, %s28
      %p39 = scmp.eq.s32.totalorder %s19, 0
      %p40 = por %p38, %p39
      %p41 = scmp.ne.s32.totalorder %s27, %s28
      %p42 = scmp.eq.s32.totalorder %s20, 1
      %p43 = por %p41, %p42
      %p45 = scmp.ne.s32.totalorder %s28, %s44
      %p46 = scmp.eq.s32.totalorder %s20, 0
      %p47 = por %p45, %p46
      %s49 = sadd.s32 %s48, 1
      %p52 = scmp.eq.s32.totalorder %s14, 1
      %p53 = scmp.ne.s32.totalorder %s48, %s50
      %p54 = scmp.eq.s32.totalorder %s14, 0
      %p55 = por %p53, %p54
      %p56 = scmp.ne.s32.totalorder %s48, %s50
      %p57 = scmp.eq.s32.totalorder %s19, 1
      %p58 = por %p56, %p57
      %p59 = scmp.ne.s32.totalorder %s50, %s51
      %p60 = scmp.eq.s32.totalorder %s19, 0
      %p61 = por %p59, %p60
      %p62 = scmp.ne.s32.totalorder %s50, %s51
      %p63 = scmp.eq.s32.totalorder %s20, 1
      %p64 = por %p62, %p63
      %p66 = scmp.ne.s32.totalorder %s51, %s65
      %p67 = scmp.eq.s32.totalorder %s20, 0
      %p68 = por %p66, %p67
      %s70 = sadd.s32 %s69, 1
      %p73 = scmp.eq.s32.totalorder %s14, 1
      %p74 = scmp.ne.s32.totalorder %s69, %s71
      %p75 = scmp.eq.s32.totalorder %s14, 0
      %p76 = por %p74, %p75
      %p77 = scmp.ne.s32.totalorder %s69, %s71
      %p78 = scmp.eq.s32.totalorder %s19, 1
      %p79 = por %p77, %p78
      %p80 = scmp.ne.s32.totalorder %s71, %s72
      %p81 = scmp.eq.s32.totalorder %s19, 0
      %p82 = por %p80, %p81
      %p83 = scmp.ne.s32.totalorder %s71, %s72
      %p84 = scmp.eq.s32.totalorder %s20, 1
      %p85 = por %p83, %p84
      %p87 = scmp.ne.s32.totalorder %s72, %s86
      %p88 = scmp.eq.s32.totalorder %s20, 0
      %p89 = por %p87, %p88
      %s91 = sadd.s32 %s90, 1
      %p94 = scmp.eq.s32.totalorder %s14, 1
      %p95 = scmp.ne.s32.totalorder %s90, %s92
      %p96 = scmp.eq.s32.totalorder %s14, 0
      %p97 = por %p95, %p96
      %p98 = scmp.ne.s32.totalorder %s90, %s92
      %p99 = scmp.eq.s32.totalorder %s19, 1
      %p100 = por %p98, %p99
      %p101 = scmp.ne.s32.totalorder %s92, %s93
      %p102 = scmp.eq.s32.totalorder %s19, 0
      %p103 = por %p101, %p102
      %p104 = scmp.ne.s32.totalorder %s92, %s93
      %p105 = scmp.eq.s32.totalorder %s20, 1
      %p106 = por %p104, %p105
      %p108 = scmp.ne.s32.totalorder %s93, %s107
      %p109 = scmp.eq.s32.totalorder %s20, 0
      %p110 = por %p108, %p109
      %s112 = sadd.s32 %s111, 1
      %p115 = scmp.eq.s32.totalorder %s14, 1
      %p116 = scmp.ne.s32.totalorder %s111, %s113
      %p117 = scmp.eq.s32.totalorder %s14, 0
      %p118 = por %p116, %p117
      %p119 = scmp.ne.s32.totalorder %s111, %s113
      %p120 = scmp.eq.s32.totalorder %s19, 1
      %p121 = por %p119, %p120
      %p122 = scmp.ne.s32.totalorder %s113, %s114
      %p123 = scmp.eq.s32.totalorder %s19, 0
      %p124 = por %p122, %p123
      %p125 = scmp.ne.s32.totalorder %s113, %s114
      %p126 = scmp.eq.s32.totalorder %s20, 1
      %p127 = por %p125, %p126
      %p129 = scmp.ne.s32.totalorder %s114, %s128
      %p130 = scmp.eq.s32.totalorder %s20, 0
      %p131 = por %p129, %p130
      %s132 = ssub.s32 %s14, %s21
      %p133 = scmp.eq.s32.totalorder %s132, 0
      %s135 = sadd.s32 %s134, 1
      %s136 = scalar_select %p133, %s134, %s135
      %p139 = pneg %p133
      %p140 = scmp.eq.s32.totalorder %s14, 1
      %p141 = por %p139, %p140
      %p142 = scmp.ne.s32.totalorder %s134, %s137
      %p143 = scmp.eq.s32.totalorder %s14, 0
      %p144 = por %p142, %p143
      %p145 = scmp.ne.s32.totalorder %s134, %s137
      %p146 = scmp.eq.s32.totalorder %s19, 1
      %p147 = por %p145, %p146
      %p148 = scmp.ne.s32.totalorder %s137, %s138
      %p149 = scmp.eq.s32.totalorder %s19, 0
      %p150 = por %p148, %p149
      %p151 = scmp.ne.s32.totalorder %s137, %s138
      %p152 = scmp.eq.s32.totalorder %s20, 1
      %p153 = por %p151, %p152
      %p155 = scmp.ne.s32.totalorder %s138, %s154
      %p156 = scmp.eq.s32.totalorder %s20, 0
      %p157 = por %p155, %p156
      %p158 = scmp.le.s32.totalorder 1, %s14
      %p159 = scmp.lt.s32.totalorder %s14, 3
      %p160 = pnand %p158, %p159
      %p161 = pneg %p160
      // Predicated region
      $region9: #{tpu_custom_call.1} parent=5 // pred_check
        _
      $region10: #{tpu_custom_call.1} parent=5 // pred_check_branch
        %163 = sbr.rel (%p160) target = $region12
      $region11: #{tpu_custom_call.1} parent=5 // pred_region
        %s164 = ssub.s32 %s14, 1
        // Predicated region
        $region13: #{tpu_custom_call.1} parent=11 // pred_check
          %p165 = pneg %p61
        $region14: #{tpu_custom_call.1} parent=11 // pred_check_branch
          %167 = sbr.rel (%p165) target = $region16
        $region15: #{tpu_custom_call.1} parent=11 // pred_region
          _
        $region16: #{tpu_custom_call.1} parent=11 // pred_fallthru
          _
        // Predicated region
        $region17: #{tpu_custom_call.1} parent=11 // pred_check
          %p168 = pneg %p82
        $region18: #{tpu_custom_call.1} parent=11 // pred_check_branch
          %170 = sbr.rel (%p168) target = $region20
        $region19: #{tpu_custom_call.1} parent=11 // pred_region
          _
        $region20: #{tpu_custom_call.1} parent=11 // pred_fallthru
          _
        // Predicated region
        $region21: #{tpu_custom_call.1} parent=11 // pred_check
          %p171 = pneg %p103
        $region22: #{tpu_custom_call.1} parent=11 // pred_check_branch
          %173 = sbr.rel (%p171) target = $region24
        $region23: #{tpu_custom_call.1} parent=11 // pred_region
          _
        $region24: #{tpu_custom_call.1} parent=11 // pred_fallthru
          _
        // Predicated region
        $region25: #{tpu_custom_call.1} parent=11 // pred_check
          %p174 = pneg %p124
        $region26: #{tpu_custom_call.1} parent=11 // pred_check_branch
          %176 = sbr.rel (%p174) target = $region28
        $region27: #{tpu_custom_call.1} parent=11 // pred_region
          _
        $region28: #{tpu_custom_call.1} parent=11 // pred_fallthru
          _
      $region12: #{tpu_custom_call.1} parent=5 // pred_fallthru
        _
      %p177 = scmp.lt.s32.totalorder %s14, 2
      // Predicated region
      $region29: #{tpu_custom_call.1} parent=5 // pred_check
        %p178 = pneg %p177
      $region30: #{tpu_custom_call.1} parent=5 // pred_check_branch
        %180 = sbr.rel (%p178) target = $region32
      $region31: #{tpu_custom_call.1} parent=5 // pred_region
        // Predicated region
        $region33: #{tpu_custom_call.1} parent=31 // pred_check
          %p181 = pneg %p34
        $region34: #{tpu_custom_call.1} parent=31 // pred_check_branch
          %183 = sbr.rel (%p181) target = $region36
        $region35: #{tpu_custom_call.1} parent=31 // pred_region
          %p184 = scmp.lt.s32.totalorder %s14, 1
          %s185 = scalar_select %p184, %s14, 1
          %s186 = smul.addr %s185, 8
          %s187 = scalar_lea.vmem %s0, %s186
        $region36: #{tpu_custom_call.1} parent=31 // pred_fallthru
          _
      $region32: #{tpu_custom_call.1} parent=5 // pred_fallthru
        _
      %p188 = scmp.le.s32.totalorder 1, %s14
      %p189 = scmp.lt.s32.totalorder %s14, 3
      %p190 = pnand %p188, %p189
      %p191 = pneg %p190
      // Predicated region
      $region37: #{tpu_custom_call.1} parent=5 // pred_check
        _
      $region38: #{tpu_custom_call.1} parent=5 // pred_check_branch
        %193 = sbr.rel (%p190) target = $region40
      $region39: #{tpu_custom_call.1} parent=5 // pred_region
        %s194 = ssub.s32 %s14, 1
        %p195 = scmp.lt.s32.totalorder %s19, 1
        %s196 = scalar_select %p195, %s19, 1
        %s197 = smul.addr %s196, 8
        %s198 = scalar_lea.vmem %s0, %s197
        %p199 = pneg %p40
        %p200 = pneg %p37
        %p201 = pneg %p61
        %p202 = pneg %p58
        %p203 = pneg %p82
        %p204 = pneg %p79
        %p205 = pneg %p103
        %p206 = pneg %p100
        %p207 = pneg %p124
        %p208 = pneg %p121
        %p209 = pneg %p150
        %p210 = pneg %p147
        %s211 = sand.u32 %s137, 1
        %s212 = scalar_lea.sflag [#allocation3], %s211
        %s213 = sand.u32 %s137, 1
        %s214 = smul.addr %s213, 8
        %s215 = scalar_lea.vmem [#allocation2], %s214
        %p216 = scmp.lt.s32.totalorder %s19, 1
        %s217 = scalar_select %p216, %s19, 1
        %s218 = smul.addr %s217, 8
        %s219 = scalar_lea.vmem %s0, %s218
        %v220 = vld [vmem:[%s219] sm:$0xff]
        %v221 = vld [vmem:[%s1] sm:$0xff]
        %v222 = vld [vmem:[%s2] sm:$0x1]
        %v224 = vlaneseq
        %v225 = vshrl.u32 %v224, 7
        %v226 = vsub.s32 0, %v225
        %v227 = vrot.slane %v222, %v226
        %vm229 = vcmask 64512
        %v231 = vsel %vm229, %v220, 0
        %233 = vmatprep.subr.mxu0 0.0
        %234 = vmatpush1.msra.mxu0 %v221
        %235 = vmatprep.subr.mxu0 0.0
        %236 = vmatpush1.msra.mxu0 0.0
        %237 = vmatprep.subr.mxu0 0.0
        %238 = vmatpush1.msra.mxu0 0.0
        %239 = vmatprep.subr.mxu0 0.0
        %240 = vmatpush1.msra.mxu0 0.0
        %241 = vmatprep.subr.mxu0 0.0
        %242 = vmatpush1.msra.mxu0 0.0
        %243 = vmatprep.subr.mxu0 0.0
        %244 = vmatpush1.msra.mxu0 0.0
        %245 = vmatprep.subr.mxu0 0.0
        %246 = vmatpush1.msra.mxu0 0.0
        %247 = vmatprep.subr.mxu0 0.0
        %248 = vmatpush1.msra.mxu0 0.0
        %249 = vmatprep.subr.mxu0 0.0
        %250 = vmatpush1.msra.mxu0 0.0
        %251 = vmatprep.subr.mxu0 0.0
        %252 = vmatpush1.msra.mxu0 0.0
        %253 = vmatprep.subr.mxu0 0.0
        %254 = vmatpush1.msra.mxu0 0.0
        %255 = vmatprep.subr.mxu0 0.0
        %256 = vmatpush1.msra.mxu0 0.0
        %257 = vmatprep.subr.mxu0 0.0
        %258 = vmatpush1.msra.mxu0 0.0
        %259 = vmatprep.subr.mxu0 0.0
        %260 = vmatpush1.msra.mxu0 0.0
        %261 = vmatprep.subr.mxu0 0.0
        %262 = vmatpush1.msra.mxu0 0.0
        %263 = vmatprep.subr.mxu0 0.0
        %264 = vmatpush1.msra.mxu0 0.0
        %265 = vmatprep.subr.mxu0 0.0
        %266 = vmatpush1.msra.mxu0 0.0
        %267 = vmatprep.subr.mxu0 0.0
        %268 = vmatpush1.msra.mxu0 0.0
        %269 = vmatprep.subr.mxu0 0.0
        %270 = vmatpush1.msra.mxu0 0.0
        %271 = vmatprep.subr.mxu0 0.0
        %272 = vmatpush1.msra.mxu0 0.0
        %273 = vmatprep.subr.mxu0 0.0
        %274 = vmatpush1.msra.mxu0 0.0
        %275 = vmatprep.subr.mxu0 0.0
        %276 = vmatpush1.msra.mxu0 0.0
        %277 = vmatprep.subr.mxu0 0.0
        %278 = vmatpush1.msra.mxu0 0.0
        %279 = vmatprep.subr.mxu0 0.0
        %280 = vmatpush1.msra.mxu0 0.0
        %281 = vmatprep.subr.mxu0 0.0
        %282 = vmatpush1.msra.mxu0 0.0
        %283 = vmatprep.subr.mxu0 0.0
        %284 = vmatpush1.msra.mxu0 0.0
        %285 = vmatprep.subr.mxu0 0.0
        %286 = vmatpush1.msra.mxu0 0.0
        %287 = vmatprep.subr.mxu0 0.0
        %288 = vmatpush1.msra.mxu0 0.0
        %289 = vmatprep.subr.mxu0 0.0
        %290 = vmatpush1.msra.mxu0 0.0
        %291 = vmatprep.subr.mxu0 0.0
        %292 = vmatpush1.msra.mxu0 0.0
        %293 = vmatprep.subr.mxu0 0.0
        %294 = vmatpush1.msra.mxu0 0.0
        %295 = vmatprep.subr.mxu0 0.0
        %296 = vmatpush1.msra.mxu0 0.0
        %297 = vmatprep.mubr.f32.mxu0 0.0
        %298 = vmatmul.mubr.f32.gmra.mrb[0].mxu0 %v231
        %v299 = vpop.f32.mrb[0].mxu0
        %v300 = vadd.f32 %v227, %v299
        %v301 = vpop.f32.mrb[0].mxu0
        %302 = vdwg.mxu0
        %v303 = vmul.f32 %v300, 0.5
        %v304 = vmul.f32 %v300, 0.044715
        %v305 = vmul.f32 %v304, %v300
        %v306 = vmul.f32 %v305, %v300
        %v307 = vadd.f32 %v300, %v306
        %v308 = vmul.f32 %v307, 0.7978846
        %v309 = vtanh.pop %v308
        %v310 = vadd.f32 %v309, 1.0
        %v311 = vmul.f32 %v303, %v310
        %s312 = scalar_lea.vmem %s1, 8
        %v313 = vld [vmem:[%s312] sm:$0xff]
        %s314 = scalar_lea.vmem %s2, 1
        %v315 = vld [vmem:[%s314] sm:$0x1]
        %v317 = vlaneseq
        %v318 = vshrl.u32 %v317, 7
        %v319 = vsub.s32 0, %v318
        %v320 = vrot.slane %v315, %v319
        %322 = vrot.lane.b32.xlu0 %v220, 120
        %v323 = vpop.permute.xlu0 %322
        %v324 = vsel %vm229, %v323, 0
        %326 = vmatprep.subr.mxu0 0.0
        %327 = vmatpush1.msra.mxu0 %v313
        %328 = vmatprep.subr.mxu0 0.0
        %329 = vmatpush1.msra.mxu0 0.0
        %330 = vmatprep.subr.mxu0 0.0
        %331 = vmatpush1.msra.mxu0 0.0
        %332 = vmatprep.subr.mxu0 0.0
        %333 = vmatpush1.msra.mxu0 0.0
        %334 = vmatprep.subr.mxu0 0.0
        %335 = vmatpush1.msra.mxu0 0.0
        %336 = vmatprep.subr.mxu0 0.0
        %337 = vmatpush1.msra.mxu0 0.0
        %338 = vmatprep.subr.mxu0 0.0
        %339 = vmatpush1.msra.mxu0 0.0
        %340 = vmatprep.subr.mxu0 0.0
        %341 = vmatpush1.msra.mxu0 0.0
        %342 = vmatprep.subr.mxu0 0.0
        %343 = vmatpush1.msra.mxu0 0.0
        %344 = vmatprep.subr.mxu0 0.0
        %345 = vmatpush1.msra.mxu0 0.0
        %346 = vmatprep.subr.mxu0 0.0
        %347 = vmatpush1.msra.mxu0 0.0
        %348 = vmatprep.subr.mxu0 0.0
        %349 = vmatpush1.msra.mxu0 0.0
        %350 = vmatprep.subr.mxu0 0.0
        %351 = vmatpush1.msra.mxu0 0.0
        %352 = vmatprep.subr.mxu0 0.0
        %353 = vmatpush1.msra.mxu0 0.0
        %354 = vmatprep.subr.mxu0 0.0
        %355 = vmatpush1.msra.mxu0 0.0
        %356 = vmatprep.subr.mxu0 0.0
        %357 = vmatpush1.msra.mxu0 0.0
        %358 = vmatprep.subr.mxu0 0.0
        %359 = vmatpush1.msra.mxu0 0.0
        %360 = vmatprep.subr.mxu0 0.0
        %361 = vmatpush1.msra.mxu0 0.0
        %362 = vmatprep.subr.mxu0 0.0
        %363 = vmatpush1.msra.mxu0 0.0
        %364 = vmatprep.subr.mxu0 0.0
        %365 = vmatpush1.msra.mxu0 0.0
        %366 = vmatprep.subr.mxu0 0.0
        %367 = vmatpush1.msra.mxu0 0.0
        %368 = vmatprep.subr.mxu0 0.0
        %369 = vmatpush1.msra.mxu0 0.0
        %370 = vmatprep.subr.mxu0 0.0
        %371 = vmatpush1.msra.mxu0 0.0
        %372 = vmatprep.subr.mxu0 0.0
        %373 = vmatpush1.msra.mxu0 0.0
        %374 = vmatprep.subr.mxu0 0.0
        %375 = vmatpush1.msra.mxu0 0.0
        %376 = vmatprep.subr.mxu0 0.0
        %377 = vmatpush1.msra.mxu0 0.0
        %378 = vmatprep.subr.mxu0 0.0
        %379 = vmatpush1.msra.mxu0 0.0
        %380 = vmatprep.subr.mxu0 0.0
        %381 = vmatpush1.msra.mxu0 0.0
        %382 = vmatprep.subr.mxu0 0.0
        %383 = vmatpush1.msra.mxu0 0.0
        %384 = vmatprep.subr.mxu0 0.0
        %385 = vmatpush1.msra.mxu0 0.0
        %386 = vmatprep.subr.mxu0 0.0
        %387 = vmatpush1.msra.mxu0 0.0
        %388 = vmatprep.subr.mxu0 0.0
        %389 = vmatpush1.msra.mxu0 0.0
        %390 = vmatprep.mubr.f32.mxu0 0.0
        %391 = vmatmul.mubr.f32.gmra.mrb[0].mxu0 %v324
        %v392 = vpop.f32.mrb[0].mxu0
        %v393 = vadd.f32 %v320, %v392
        %v394 = vpop.f32.mrb[0].mxu0
        %395 = vdwg.mxu0
        %v396 = vmul.f32 %v393, 0.5
        %v397 = vmul.f32 %v393, 0.044715
        %v398 = vmul.f32 %v397, %v393
        %v399 = vmul.f32 %v398, %v393
        %v400 = vadd.f32 %v393, %v399
        %v401 = vmul.f32 %v400, 0.7978846
        %v402 = vtanh.pop %v401
        %v403 = vadd.f32 %v402, 1.0
        %v404 = vmul.f32 %v396, %v403
        %s405 = scalar_lea.vmem %s1, 16
        %v406 = vld [vmem:[%s405] sm:$0xff]
        %s407 = scalar_lea.vmem %s2, 2
        %v408 = vld [vmem:[%s407] sm:$0x1]
        %v410 = vlaneseq
        %v411 = vshrl.u32 %v410, 7
        %v412 = vsub.s32 0, %v411
        %v413 = vrot.slane %v408, %v412
        %415 = vrot.lane.b32.xlu0 %v220, 112
        %v416 = vpop.permute.xlu0 %415
        %v417 = vsel %vm229, %v416, 0
        %419 = vmatprep.subr.mxu0 0.0
        %420 = vmatpush1.msra.mxu0 %v406
        %421 = vmatprep.subr.mxu0 0.0
        %422 = vmatpush1.msra.mxu0 0.0
        %423 = vmatprep.subr.mxu0 0.0
        %424 = vmatpush1.msra.mxu0 0.0
        %425 = vmatprep.subr.mxu0 0.0
        %426 = vmatpush1.msra.mxu0 0.0
        %427 = vmatprep.subr.mxu0 0.0
        %428 = vmatpush1.msra.mxu0 0.0
        %429 = vmatprep.subr.mxu0 0.0
        %430 = vmatpush1.msra.mxu0 0.0
        %431 = vmatprep.subr.mxu0 0.0
        %432 = vmatpush1.msra.mxu0 0.0
        %433 = vmatprep.subr.mxu0 0.0
        %434 = vmatpush1.msra.mxu0 0.0
        %435 = vmatprep.subr.mxu0 0.0
        %436 = vmatpush1.msra.mxu0 0.0
        %437 = vmatprep.subr.mxu0 0.0
        %438 = vmatpush1.msra.mxu0 0.0
        %439 = vmatprep.subr.mxu0 0.0
        %440 = vmatpush1.msra.mxu0 0.0
        %441 = vmatprep.subr.mxu0 0.0
        %442 = vmatpush1.msra.mxu0 0.0
        %443 = vmatprep.subr.mxu0 0.0
        %444 = vmatpush1.msra.mxu0 0.0
        %445 = vmatprep.subr.mxu0 0.0
        %446 = vmatpush1.msra.mxu0 0.0
        %447 = vmatprep.subr.mxu0 0.0
        %448 = vmatpush1.msra.mxu0 0.0
        %449 = vmatprep.subr.mxu0 0.0
        %450 = vmatpush1.msra.mxu0 0.0
        %451 = vmatprep.subr.mxu0 0.0
        %452 = vmatpush1.msra.mxu0 0.0
        %453 = vmatprep.subr.mxu0 0.0
        %454 = vmatpush1.msra.mxu0 0.0
        %455 = vmatprep.subr.mxu0 0.0
        %456 = vmatpush1.msra.mxu0 0.0
        %457 = vmatprep.subr.mxu0 0.0
        %458 = vmatpush1.msra.mxu0 0.0
        %459 = vmatprep.subr.mxu0 0.0
        %460 = vmatpush1.msra.mxu0 0.0
        %461 = vmatprep.subr.mxu0 0.0
        %462 = vmatpush1.msra.mxu0 0.0
        %463 = vmatprep.subr.mxu0 0.0
        %464 = vmatpush1.msra.mxu0 0.0
        %465 = vmatprep.subr.mxu0 0.0
        %466 = vmatpush1.msra.mxu0 0.0
        %467 = vmatprep.subr.mxu0 0.0
        %468 = vmatpush1.msra.mxu0 0.0
        %469 = vmatprep.subr.mxu0 0.0
        %470 = vmatpush1.msra.mxu0 0.0
        %471 = vmatprep.subr.mxu0 0.0
        %472 = vmatpush1.msra.mxu0 0.0
        %473 = vmatprep.subr.mxu0 0.0
        %474 = vmatpush1.msra.mxu0 0.0
        %475 = vmatprep.subr.mxu0 0.0
        %476 = vmatpush1.msra.mxu0 0.0
        %477 = vmatprep.subr.mxu0 0.0
        %478 = vmatpush1.msra.mxu0 0.0
        %479 = vmatprep.subr.mxu0 0.0
        %480 = vmatpush1.msra.mxu0 0.0
        %481 = vmatprep.subr.mxu0 0.0
        %482 = vmatpush1.msra.mxu0 0.0
        %483 = vmatprep.mubr.f32.mxu0 0.0
        %484 = vmatmul.mubr.f32.gmra.mrb[0].mxu0 %v417
        %v485 = vpop.f32.mrb[0].mxu0
        %v486 = vadd.f32 %v413, %v485
        %v487 = vpop.f32.mrb[0].mxu0
        %488 = vdwg.mxu0
        %v489 = vmul.f32 %v486, 0.5
        %v490 = vmul.f32 %v486, 0.044715
        %v491 = vmul.f32 %v490, %v486
        %v492 = vmul.f32 %v491, %v486
        %v493 = vadd.f32 %v486, %v492
        %v494 = vmul.f32 %v493, 0.7978846
        %v495 = vtanh.pop %v494
        %v496 = vadd.f32 %v495, 1.0
        %v497 = vmul.f32 %v489, %v496
        %s498 = scalar_lea.vmem %s1, 24
        %v499 = vld [vmem:[%s498] sm:$0xff]
        %s500 = scalar_lea.vmem %s2, 3
        %v501 = vld [vmem:[%s500] sm:$0x1]
        %v503 = vlaneseq
        %v504 = vshrl.u32 %v503, 7
        %v505 = vsub.s32 0, %v504
        %v506 = vrot.slane %v501, %v505
        %508 = vrot.lane.b32.xlu0 %v220, 104
        %v509 = vpop.permute.xlu0 %508
        %v510 = vsel %vm229, %v509, 0
        %512 = vmatprep.subr.mxu0 0.0
        %513 = vmatpush1.msra.mxu0 %v499
        %514 = vmatprep.subr.mxu0 0.0
        %515 = vmatpush1.msra.mxu0 0.0
        %516 = vmatprep.subr.mxu0 0.0
        %517 = vmatpush1.msra.mxu0 0.0
        %518 = vmatprep.subr.mxu0 0.0
        %519 = vmatpush1.msra.mxu0 0.0
        %520 = vmatprep.subr.mxu0 0.0
        %521 = vmatpush1.msra.mxu0 0.0
        %522 = vmatprep.subr.mxu0 0.0
        %523 = vmatpush1.msra.mxu0 0.0
        %524 = vmatprep.subr.mxu0 0.0
        %525 = vmatpush1.msra.mxu0 0.0
        %526 = vmatprep.subr.mxu0 0.0
        %527 = vmatpush1.msra.mxu0 0.0
        %528 = vmatprep.subr.mxu0 0.0
        %529 = vmatpush1.msra.mxu0 0.0
        %530 = vmatprep.subr.mxu0 0.0
        %531 = vmatpush1.msra.mxu0 0.0
        %532 = vmatprep.subr.mxu0 0.0
        %533 = vmatpush1.msra.mxu0 0.0
        %534 = vmatprep.subr.mxu0 0.0
        %535 = vmatpush1.msra.mxu0 0.0
        %536 = vmatprep.subr.mxu0 0.0
        %537 = vmatpush1.msra.mxu0 0.0
        %538 = vmatprep.subr.mxu0 0.0
        %539 = vmatpush1.msra.mxu0 0.0
        %540 = vmatprep.subr.mxu0 0.0
        %541 = vmatpush1.msra.mxu0 0.0
        %542 = vmatprep.subr.mxu0 0.0
        %543 = vmatpush1.msra.mxu0 0.0
        %544 = vmatprep.subr.mxu0 0.0
        %545 = vmatpush1.msra.mxu0 0.0
        %546 = vmatprep.subr.mxu0 0.0
        %547 = vmatpush1.msra.mxu0 0.0
        %548 = vmatprep.subr.mxu0 0.0
        %549 = vmatpush1.msra.mxu0 0.0
        %550 = vmatprep.subr.mxu0 0.0
        %551 = vmatpush1.msra.mxu0 0.0
        %552 = vmatprep.subr.mxu0 0.0
        %553 = vmatpush1.msra.mxu0 0.0
        %554 = vmatprep.subr.mxu0 0.0
        %555 = vmatpush1.msra.mxu0 0.0
        %556 = vmatprep.subr.mxu0 0.0
        %557 = vmatpush1.msra.mxu0 0.0
        %558 = vmatprep.subr.mxu0 0.0
        %559 = vmatpush1.msra.mxu0 0.0
        %560 = vmatprep.subr.mxu0 0.0
        %561 = vmatpush1.msra.mxu0 0.0
        %562 = vmatprep.subr.mxu0 0.0
        %563 = vmatpush1.msra.mxu0 0.0
        %564 = vmatprep.subr.mxu0 0.0
        %565 = vmatpush1.msra.mxu0 0.0
        %566 = vmatprep.subr.mxu0 0.0
        %567 = vmatpush1.msra.mxu0 0.0
        %568 = vmatprep.subr.mxu0 0.0
        %569 = vmatpush1.msra.mxu0 0.0
        %570 = vmatprep.subr.mxu0 0.0
        %571 = vmatpush1.msra.mxu0 0.0
        %572 = vmatprep.subr.mxu0 0.0
        %573 = vmatpush1.msra.mxu0 0.0
        %574 = vmatprep.subr.mxu0 0.0
        %575 = vmatpush1.msra.mxu0 0.0
        %576 = vmatprep.mubr.f32.mxu0 0.0
        %577 = vmatmul.mubr.f32.gmra.mrb[0].mxu0 %v510
        %v578 = vpop.f32.mrb[0].mxu0
        %v579 = vadd.f32 %v506, %v578
        %v580 = vpop.f32.mrb[0].mxu0
        %581 = vdwg.mxu0
        %v582 = vmul.f32 %v579, 0.5
        %v583 = vmul.f32 %v579, 0.044715
        %v584 = vmul.f32 %v583, %v579
        %v585 = vmul.f32 %v584, %v579
        %v586 = vadd.f32 %v579, %v585
        %v587 = vmul.f32 %v586, 0.7978846
        %v588 = vtanh.pop %v587
        %v589 = vadd.f32 %v588, 1.0
        %v590 = vmul.f32 %v582, %v589
        %592 = vrot.lane.b32.xlu0 %v404, 8
        %v593 = vpop.permute.xlu0 %592
        %596 = vrot.lane.b32.xlu0 %v497, 16
        %v597 = vpop.permute.xlu0 %596
        %600 = vrot.lane.b32.xlu0 %v590, 24
        %v601 = vpop.permute.xlu0 %600
        %v603 = vsel %vm229, %v311, %v593
        %vm604 = vcmask 130048
        %v605 = vsel %vm604, %v603, %v597
        %vm606 = vcmask 195584
        %v607 = vsel %vm606, %v605, %v601
        %v608 = vld [vmem:[%s3] sm:$0xff]
        %v609 = vld [vmem:[%s3 + $0x8] sm:$0xff]
        %v610 = vld [vmem:[%s3 + $0x10] sm:$0xff]
        %v611 = vld [vmem:[%s3 + $0x18] sm:$0xff]
        %v612 = vld [vmem:[%s4] sm:$0x1]
        %v614 = vlaneseq
        %v615 = vshrl.u32 %v614, 7
        %v616 = vsub.s32 0, %v615
        %v617 = vrot.slane %v612, %v616
        %vm619 = vcmask 261120
        %v621 = vsel %vm619, %v607, 0
        %623 = vmatprep.subr.mxu0 0.0
        %624 = vmatpush1.msra.mxu0 %v608
        %625 = vmatprep.subr.mxu0 0.0
        %626 = vmatpush1.msra.mxu0 %v609
        %627 = vmatprep.subr.mxu0 0.0
        %628 = vmatpush1.msra.mxu0 %v610
        %629 = vmatprep.subr.mxu0 0.0
        %630 = vmatpush1.msra.mxu0 %v611
        %631 = vmatprep.subr.mxu0 0.0
        %632 = vmatpush1.msra.mxu0 0.0
        %633 = vmatprep.subr.mxu0 0.0
        %634 = vmatpush1.msra.mxu0 0.0
        %635 = vmatprep.subr.mxu0 0.0
        %636 = vmatpush1.msra.mxu0 0.0
        %637 = vmatprep.subr.mxu0 0.0
        %638 = vmatpush1.msra.mxu0 0.0
        %639 = vmatprep.subr.mxu0 0.0
        %640 = vmatpush1.msra.mxu0 0.0
        %641 = vmatprep.subr.mxu0 0.0
        %642 = vmatpush1.msra.mxu0 0.0
        %643 = vmatprep.subr.mxu0 0.0
        %644 = vmatpush1.msra.mxu0 0.0
        %645 = vmatprep.subr.mxu0 0.0
        %646 = vmatpush1.msra.mxu0 0.0
        %647 = vmatprep.subr.mxu0 0.0
        %648 = vmatpush1.msra.mxu0 0.0
        %649 = vmatprep.subr.mxu0 0.0
        %650 = vmatpush1.msra.mxu0 0.0
        %651 = vmatprep.subr.mxu0 0.0
        %652 = vmatpush1.msra.mxu0 0.0
        %653 = vmatprep.subr.mxu0 0.0
        %654 = vmatpush1.msra.mxu0 0.0
        %655 = vmatprep.subr.mxu0 0.0
        %656 = vmatpush1.msra.mxu0 0.0
        %657 = vmatprep.subr.mxu0 0.0
        %658 = vmatpush1.msra.mxu0 0.0
        %659 = vmatprep.subr.mxu0 0.0
        %660 = vmatpush1.msra.mxu0 0.0
        %661 = vmatprep.subr.mxu0 0.0
        %662 = vmatpush1.msra.mxu0 0.0
        %663 = vmatprep.subr.mxu0 0.0
        %664 = vmatpush1.msra.mxu0 0.0
        %665 = vmatprep.subr.mxu0 0.0
        %666 = vmatpush1.msra.mxu0 0.0
        %667 = vmatprep.subr.mxu0 0.0
        %668 = vmatpush1.msra.mxu0 0.0
        %669 = vmatprep.subr.mxu0 0.0
        %670 = vmatpush1.msra.mxu0 0.0
        %671 = vmatprep.subr.mxu0 0.0
        %672 = vmatpush1.msra.mxu0 0.0
        %673 = vmatprep.subr.mxu0 0.0
        %674 = vmatpush1.msra.mxu0 0.0
        %675 = vmatprep.subr.mxu0 0.0
        %676 = vmatpush1.msra.mxu0 0.0
        %677 = vmatprep.subr.mxu0 0.0
        %678 = vmatpush1.msra.mxu0 0.0
        %679 = vmatprep.subr.mxu0 0.0
        %680 = vmatpush1.msra.mxu0 0.0
        %681 = vmatprep.subr.mxu0 0.0
        %682 = vmatpush1.msra.mxu0 0.0
        %683 = vmatprep.subr.mxu0 0.0
        %684 = vmatpush1.msra.mxu0 0.0
        %685 = vmatprep.subr.mxu0 0.0
        %686 = vmatpush1.msra.mxu0 0.0
        %687 = vmatprep.mubr.f32.mxu0 0.0
        %688 = vmatmul.mubr.f32.gmra.mrb[0].mxu0 %v621
        %v689 = vpop.f32.mrb[0].mxu0
        %v690 = vadd.f32 %v617, %v689
        %v691 = vpop.f32.mrb[0].mxu0
        %692 = vdwg.mxu0
        %694 = vrot.lane.b32.xlu0 %v311, 120
        %v695 = vpop.permute.xlu0 %694
        %697 = vrot.lane.b32.xlu0 %v497, 8
        %v698 = vpop.permute.xlu0 %697
        %700 = vrot.lane.b32.xlu0 %v590, 16
        %v701 = vpop.permute.xlu0 %700
        %v703 = vsel %vm229, %v695, %v404
        %v704 = vsel %vm604, %v703, %v698
        %v705 = vsel %vm606, %v704, %v701
        %s706 = scalar_lea.vmem %s3, 32
        %v707 = vld [vmem:[%s706] sm:$0xff]
        %v708 = vld [vmem:[%s706 + $0x8] sm:$0xff]
        %v709 = vld [vmem:[%s706 + $0x10] sm:$0xff]
        %v710 = vld [vmem:[%s706 + $0x18] sm:$0xff]
        %s711 = scalar_lea.vmem %s4, 1
        %v712 = vld [vmem:[%s711] sm:$0x1]
        %v714 = vlaneseq
        %v715 = vshrl.u32 %v714, 7
        %v716 = vsub.s32 0, %v715
        %v717 = vrot.slane %v712, %v716
        %v720 = vsel %vm619, %v705, 0
        %722 = vmatprep.subr.mxu0 0.0
        %723 = vmatpush1.msra.mxu0 %v707
        %724 = vmatprep.subr.mxu0 0.0
        %725 = vmatpush1.msra.mxu0 %v708
        %726 = vmatprep.subr.mxu0 0.0
        %727 = vmatpush1.msra.mxu0 %v709
        %728 = vmatprep.subr.mxu0 0.0
        %729 = vmatpush1.msra.mxu0 %v710
        %730 = vmatprep.subr.mxu0 0.0
        %731 = vmatpush1.msra.mxu0 0.0
        %732 = vmatprep.subr.mxu0 0.0
        %733 = vmatpush1.msra.mxu0 0.0
        %734 = vmatprep.subr.mxu0 0.0
        %735 = vmatpush1.msra.mxu0 0.0
        %736 = vmatprep.subr.mxu0 0.0
        %737 = vmatpush1.msra.mxu0 0.0
        %738 = vmatprep.subr.mxu0 0.0
        %739 = vmatpush1.msra.mxu0 0.0
        %740 = vmatprep.subr.mxu0 0.0
        %741 = vmatpush1.msra.mxu0 0.0
        %742 = vmatprep.subr.mxu0 0.0
        %743 = vmatpush1.msra.mxu0 0.0
        %744 = vmatprep.subr.mxu0 0.0
        %745 = vmatpush1.msra.mxu0 0.0
        %746 = vmatprep.subr.mxu0 0.0
        %747 = vmatpush1.msra.mxu0 0.0
        %748 = vmatprep.subr.mxu0 0.0
        %749 = vmatpush1.msra.mxu0 0.0
        %750 = vmatprep.subr.mxu0 0.0
        %751 = vmatpush1.msra.mxu0 0.0
        %752 = vmatprep.subr.mxu0 0.0
        %753 = vmatpush1.msra.mxu0 0.0
        %754 = vmatprep.subr.mxu0 0.0
        %755 = vmatpush1.msra.mxu0 0.0
        %756 = vmatprep.subr.mxu0 0.0
        %757 = vmatpush1.msra.mxu0 0.0
        %758 = vmatprep.subr.mxu0 0.0
        %759 = vmatpush1.msra.mxu0 0.0
        %760 = vmatprep.subr.mxu0 0.0
        %761 = vmatpush1.msra.mxu0 0.0
        %762 = vmatprep.subr.mxu0 0.0
        %763 = vmatpush1.msra.mxu0 0.0
        %764 = vmatprep.subr.mxu0 0.0
        %765 = vmatpush1.msra.mxu0 0.0
        %766 = vmatprep.subr.mxu0 0.0
        %767 = vmatpush1.msra.mxu0 0.0
        %768 = vmatprep.subr.mxu0 0.0
        %769 = vmatpush1.msra.mxu0 0.0
        %770 = vmatprep.subr.mxu0 0.0
        %771 = vmatpush1.msra.mxu0 0.0
        %772 = vmatprep.subr.mxu0 0.0
        %773 = vmatpush1.msra.mxu0 0.0
        %774 = vmatprep.subr.mxu0 0.0
        %775 = vmatpush1.msra.mxu0 0.0
        %776 = vmatprep.subr.mxu0 0.0
        %777 = vmatpush1.msra.mxu0 0.0
        %778 = vmatprep.subr.mxu0 0.0
        %779 = vmatpush1.msra.mxu0 0.0
        %780 = vmatprep.subr.mxu0 0.0
        %781 = vmatpush1.msra.mxu0 0.0
        %782 = vmatprep.subr.mxu0 0.0
        %783 = vmatpush1.msra.mxu0 0.0
        %784 = vmatprep.subr.mxu0 0.0
        %785 = vmatpush1.msra.mxu0 0.0
        %786 = vmatprep.mubr.f32.mxu0 0.0
        %787 = vmatmul.mubr.f32.gmra.mrb[0].mxu0 %v720
        %v788 = vpop.f32.mrb[0].mxu0
        %v789 = vadd.f32 %v717, %v788
        %v790 = vpop.f32.mrb[0].mxu0
        %791 = vdwg.mxu0
        %792 = vrot.lane.b32.xlu0 %v311, 112
        %v793 = vpop.permute.xlu0 %792
        %795 = vrot.lane.b32.xlu0 %v404, 120
        %v796 = vpop.permute.xlu0 %795
        %798 = vrot.lane.b32.xlu0 %v590, 8
        %v799 = vpop.permute.xlu0 %798
        %v801 = vsel %vm229, %v793, %v796
        %v802 = vsel %vm604, %v801, %v497
        %v803 = vsel %vm606, %v802, %v799
        %s804 = scalar_lea.vmem %s3, 64
        %v805 = vld [vmem:[%s804] sm:$0xff]
        %v806 = vld [vmem:[%s804 + $0x8] sm:$0xff]
        %v807 = vld [vmem:[%s804 + $0x10] sm:$0xff]
        %v808 = vld [vmem:[%s804 + $0x18] sm:$0xff]
        %s809 = scalar_lea.vmem %s4, 2
        %v810 = vld [vmem:[%s809] sm:$0x1]
        %v812 = vlaneseq
        %v813 = vshrl.u32 %v812, 7
        %v814 = vsub.s32 0, %v813
        %v815 = vrot.slane %v810, %v814
        %v818 = vsel %vm619, %v803, 0
        %820 = vmatprep.subr.mxu0 0.0
        %821 = vmatpush1.msra.mxu0 %v805
        %822 = vmatprep.subr.mxu0 0.0
        %823 = vmatpush1.msra.mxu0 %v806
        %824 = vmatprep.subr.mxu0 0.0
        %825 = vmatpush1.msra.mxu0 %v807
        %826 = vmatprep.subr.mxu0 0.0
        %827 = vmatpush1.msra.mxu0 %v808
        %828 = vmatprep.subr.mxu0 0.0
        %829 = vmatpush1.msra.mxu0 0.0
        %830 = vmatprep.subr.mxu0 0.0
        %831 = vmatpush1.msra.mxu0 0.0
        %832 = vmatprep.subr.mxu0 0.0
        %833 = vmatpush1.msra.mxu0 0.0
        %834 = vmatprep.subr.mxu0 0.0
        %835 = vmatpush1.msra.mxu0 0.0
        %836 = vmatprep.subr.mxu0 0.0
        %837 = vmatpush1.msra.mxu0 0.0
        %838 = vmatprep.subr.mxu0 0.0
        %839 = vmatpush1.msra.mxu0 0.0
        %840 = vmatprep.subr.mxu0 0.0
        %841 = vmatpush1.msra.mxu0 0.0
        %842 = vmatprep.subr.mxu0 0.0
        %843 = vmatpush1.msra.mxu0 0.0
        %844 = vmatprep.subr.mxu0 0.0
        %845 = vmatpush1.msra.mxu0 0.0
        %846 = vmatprep.subr.mxu0 0.0
        %847 = vmatpush1.msra.mxu0 0.0
        %848 = vmatprep.subr.mxu0 0.0
        %849 = vmatpush1.msra.mxu0 0.0
        %850 = vmatprep.subr.mxu0 0.0
        %851 = vmatpush1.msra.mxu0 0.0
        %852 = vmatprep.subr.mxu0 0.0
        %853 = vmatpush1.msra.mxu0 0.0
        %854 = vmatprep.subr.mxu0 0.0
        %855 = vmatpush1.msra.mxu0 0.0
        %856 = vmatprep.subr.mxu0 0.0
        %857 = vmatpush1.msra.mxu0 0.0
        %858 = vmatprep.subr.mxu0 0.0
        %859 = vmatpush1.msra.mxu0 0.0
        %860 = vmatprep.subr.mxu0 0.0
        %861 = vmatpush1.msra.mxu0 0.0
        %862 = vmatprep.subr.mxu0 0.0
        %863 = vmatpush1.msra.mxu0 0.0
        %864 = vmatprep.subr.mxu0 0.0
        %865 = vmatpush1.msra.mxu0 0.0
        %866 = vmatprep.subr.mxu0 0.0
        %867 = vmatpush1.msra.mxu0 0.0
        %868 = vmatprep.subr.mxu0 0.0
        %869 = vmatpush1.msra.mxu0 0.0
        %870 = vmatprep.subr.mxu0 0.0
        %871 = vmatpush1.msra.mxu0 0.0
        %872 = vmatprep.subr.mxu0 0.0
        %873 = vmatpush1.msra.mxu0 0.0
        %874 = vmatprep.subr.mxu0 0.0
        %875 = vmatpush1.msra.mxu0 0.0
        %876 = vmatprep.subr.mxu0 0.0
        %877 = vmatpush1.msra.mxu0 0.0
        %878 = vmatprep.subr.mxu0 0.0
        %879 = vmatpush1.msra.mxu0 0.0
        %880 = vmatprep.subr.mxu0 0.0
        %881 = vmatpush1.msra.mxu0 0.0
        %882 = vmatprep.subr.mxu0 0.0
        %883 = vmatpush1.msra.mxu0 0.0
        %884 = vmatprep.mubr.f32.mxu0 0.0
        %885 = vmatmul.mubr.f32.gmra.mrb[0].mxu0 %v818
        %v886 = vpop.f32.mrb[0].mxu0
        %v887 = vadd.f32 %v815, %v886
        %v888 = vpop.f32.mrb[0].mxu0
        %889 = vdwg.mxu0
        %890 = vrot.lane.b32.xlu0 %v311, 104
        %v891 = vpop.permute.xlu0 %890
        %893 = vrot.lane.b32.xlu0 %v404, 112
        %v894 = vpop.permute.xlu0 %893
        %896 = vrot.lane.b32.xlu0 %v497, 120
        %v897 = vpop.permute.xlu0 %896
        %v899 = vsel %vm229, %v891, %v894
        %v900 = vsel %vm604, %v899, %v897
        %v901 = vsel %vm606, %v900, %v590
        %s902 = scalar_lea.vmem %s3, 96
        %v903 = vld [vmem:[%s902] sm:$0xff]
        %v904 = vld [vmem:[%s902 + $0x8] sm:$0xff]
        %v905 = vld [vmem:[%s902 + $0x10] sm:$0xff]
        %v906 = vld [vmem:[%s902 + $0x18] sm:$0xff]
        %s907 = scalar_lea.vmem %s4, 3
        %v908 = vld [vmem:[%s907] sm:$0x1]
        %v910 = vlaneseq
        %v911 = vshrl.u32 %v910, 7
        %v912 = vsub.s32 0, %v911
        %v913 = vrot.slane %v908, %v912
        %v916 = vsel %vm619, %v901, 0
        %918 = vmatprep.subr.mxu0 0.0
        %919 = vmatpush1.msra.mxu0 %v903
        %920 = vmatprep.subr.mxu0 0.0
        %921 = vmatpush1.msra.mxu0 %v904
        %922 = vmatprep.subr.mxu0 0.0
        %923 = vmatpush1.msra.mxu0 %v905
        %924 = vmatprep.subr.mxu0 0.0
        %925 = vmatpush1.msra.mxu0 %v906
        %926 = vmatprep.subr.mxu0 0.0
        %927 = vmatpush1.msra.mxu0 0.0
        %928 = vmatprep.subr.mxu0 0.0
        %929 = vmatpush1.msra.mxu0 0.0
        %930 = vmatprep.subr.mxu0 0.0
        %931 = vmatpush1.msra.mxu0 0.0
        %932 = vmatprep.subr.mxu0 0.0
        %933 = vmatpush1.msra.mxu0 0.0
        %934 = vmatprep.subr.mxu0 0.0
        %935 = vmatpush1.msra.mxu0 0.0
        %936 = vmatprep.subr.mxu0 0.0
        %937 = vmatpush1.msra.mxu0 0.0
        %938 = vmatprep.subr.mxu0 0.0
        %939 = vmatpush1.msra.mxu0 0.0
        %940 = vmatprep.subr.mxu0 0.0
        %941 = vmatpush1.msra.mxu0 0.0
        %942 = vmatprep.subr.mxu0 0.0
        %943 = vmatpush1.msra.mxu0 0.0
        %944 = vmatprep.subr.mxu0 0.0
        %945 = vmatpush1.msra.mxu0 0.0
        %946 = vmatprep.subr.mxu0 0.0
        %947 = vmatpush1.msra.mxu0 0.0
        %948 = vmatprep.subr.mxu0 0.0
        %949 = vmatpush1.msra.mxu0 0.0
        %950 = vmatprep.subr.mxu0 0.0
        %951 = vmatpush1.msra.mxu0 0.0
        %952 = vmatprep.subr.mxu0 0.0
        %953 = vmatpush1.msra.mxu0 0.0
        %954 = vmatprep.subr.mxu0 0.0
        %955 = vmatpush1.msra.mxu0 0.0
        %956 = vmatprep.subr.mxu0 0.0
        %957 = vmatpush1.msra.mxu0 0.0
        %958 = vmatprep.subr.mxu0 0.0
        %959 = vmatpush1.msra.mxu0 0.0
        %960 = vmatprep.subr.mxu0 0.0
        %961 = vmatpush1.msra.mxu0 0.0
        %962 = vmatprep.subr.mxu0 0.0
        %963 = vmatpush1.msra.mxu0 0.0
        %964 = vmatprep.subr.mxu0 0.0
        %965 = vmatpush1.msra.mxu0 0.0
        %966 = vmatprep.subr.mxu0 0.0
        %967 = vmatpush1.msra.mxu0 0.0
        %968 = vmatprep.subr.mxu0 0.0
        %969 = vmatpush1.msra.mxu0 0.0
        %970 = vmatprep.subr.mxu0 0.0
        %971 = vmatpush1.msra.mxu0 0.0
        %972 = vmatprep.subr.mxu0 0.0
        %973 = vmatpush1.msra.mxu0 0.0
        %974 = vmatprep.subr.mxu0 0.0
        %975 = vmatpush1.msra.mxu0 0.0
        %976 = vmatprep.subr.mxu0 0.0
        %977 = vmatpush1.msra.mxu0 0.0
        %978 = vmatprep.subr.mxu0 0.0
        %979 = vmatpush1.msra.mxu0 0.0
        %980 = vmatprep.subr.mxu0 0.0
        %981 = vmatpush1.msra.mxu0 0.0
        %982 = vmatprep.mubr.f32.mxu0 0.0
        %983 = vmatmul.mubr.f32.gmra.mrb[0].mxu0 %v916
        %v984 = vpop.f32.mrb[0].mxu0
        %v985 = vadd.f32 %v913, %v984
        %v986 = vpop.f32.mrb[0].mxu0
        %987 = vdwg.mxu0
        %989 = vrot.lane.b32.xlu0 %v789, 8
        %v990 = vpop.permute.xlu0 %989
        %993 = vrot.lane.b32.xlu0 %v887, 16
        %v994 = vpop.permute.xlu0 %993
        %997 = vrot.lane.b32.xlu0 %v985, 24
        %v998 = vpop.permute.xlu0 %997
        %v1000 = vsel %vm229, %v690, %v990
        %v1001 = vsel %vm604, %v1000, %v994
        %v1002 = vsel %vm606, %v1001, %v998
        %1003 = vst.msk [vmem:[%s215] sm:$0xff] %vm619, %v1002
        %s1004 = sand.u32 %s137, 1
        %s1005 = scalar_lea.sflag [#allocation3], %s1004
        %s1006 = sand.u32 %s137, 1
        %s1007 = smul.addr %s1006, 8
        %s1008 = scalar_lea.vmem [#allocation2], %s1007
        // Predicated region
        $region41: #{tpu_custom_call.1} parent=39 // pred_check
          %p1009 = pneg %p147
        $region42: #{tpu_custom_call.1} parent=39 // pred_check_branch
          %1011 = sbr.rel (%p1009) target = $region44
        $region43: #{tpu_custom_call.1} parent=39 // pred_region
          %s1013 = ssub.s32 128, 128
          %1014 = vsyncadd %s1005, %s1013
          %s1015 = smul.addr %s19, 128
          %s1016 = scalar_lea.hbm %s5, %s1015
          %s1018 = sshll.u32 %s1008, 4
          %s1019 = int_to_ptr.vmem [resolvable:$true] %s1018
          %1021 = dma.vmem_to_hbm [thread:$0]  %s1019, 128, %s1016, %s1005
        $region44: #{tpu_custom_call.1} parent=39 // pred_fallthru
          _
      $region40: #{tpu_custom_call.1} parent=5 // pred_fallthru
        _
      %p1022 = scmp.le.s32.totalorder 2, %s14
      // Predicated region
      $region45: #{tpu_custom_call.1} parent=5 // pred_check
        %p1023 = pneg %p1022
      $region46: #{tpu_custom_call.1} parent=5 // pred_check_branch
        %1025 = sbr.rel (%p1023) target = $region48
      $region47: #{tpu_custom_call.1} parent=5 // pred_region
        %s1026 = ssub.s32 %s14, 2
        // Predicated region
        $region49: #{tpu_custom_call.1} parent=47 // pred_check
          %p1027 = pneg %p153
        $region50: #{tpu_custom_call.1} parent=47 // pred_check_branch
          %1029 = sbr.rel (%p1027) target = $region52
        $region51: #{tpu_custom_call.1} parent=47 // pred_region
          %s1030 = sand.u32 %s138, 1
          %s1031 = scalar_lea.sflag [#allocation3], %s1030
          %s1032 = sand.u32 %s138, 1
          %s1033 = smul.addr %s1032, 8
          %s1034 = scalar_lea.vmem [#allocation2], %s1033
          %1035 = dma.done %s1031, 128
        $region52: #{tpu_custom_call.1} parent=47 // pred_fallthru
          _
      $region48: #{tpu_custom_call.1} parent=5 // pred_fallthru
        _
    $region6: #{tpu_custom_call.1} parent=1 // loop_footer
      %s18 = sadd.s32 1, %s14
    $region7: #{tpu_custom_call.1} parent=1 // loop_footer_branch
      %13 = sbr.rel target = $region3
    $region8: #{tpu_custom_call.1} parent=1 // loop_exit
      _
    %1036 = vsyncpa [#allocation3], 1
    %s1037 = scalar_lea.sflag [#allocation3], 1
    %1038 = vsyncpa %s1037, 1

// kernel: tpu_custom_call.1
$region0: #{tpu_custom_call.1}
  #allocation0 [shape = 'u32[]', space=smem, size = 0x4, offset = 0x4, fixed_abs, tag = 'smem constant byte address 0x4 - core index']
  #allocation1 [shape = 'u32[144,128]{1,0:T(1,128)}', space=vmem, size = 0x12000, scoped, tag = 'internal scratch']
  %s0 = inlined_call_operand.vmem [shape: f32[16,32], index: 0, kind: input, shape index: {}]
  %s1 = inlined_call_operand.vmem [shape: f32[4,8,32], index: 1, kind: input, shape index: {}]
  %s2 = inlined_call_operand.vmem [shape: f32[4,1,32], index: 2, kind: input, shape index: {}]
  %s3 = inlined_call_operand.vmem [shape: f32[4,32,8], index: 3, kind: input, shape index: {}]
  %s4 = inlined_call_operand.vmem [shape: f32[4,1,8], index: 4, kind: input, shape index: {}]
  %s5 = inlined_call_operand.hbm [shape: f32[16,32], index: 5, kind: output, shape index: {}]
  %s6 = sld [smem:[#allocation0]]
  $region53: #{tpu_custom_call.1} parent=0
    _
  %s8 = ssub.s32 1, %s6
  %s9 = scalar_select 0, %s8, %s6
  $region1: #{tpu_custom_call.1} parent=0
    #allocation2 [shape = 'u8[8192]{0}', space=vmem, size = 0x2000, scoped, tag = 'output window, operand 0']
    #allocation3 [shape = 's32[2]{0}', space=sflag, size = 0x8, scoped, tag = 'scoped memory for tpu_custom_call.1']
    %10 = vsyncpa [#allocation3], 0
    %s11 = scalar_lea.sflag [#allocation3], 1
    %12 = vsyncpa %s11, 0
    loop: start=0, step=1, limit=4
    $region2: #{tpu_custom_call.1} parent=1 // loop_pre_header
      _
    $region3: #{tpu_custom_call.1} parent=1 // loop_header
      %s14 = sphi 0, %s18
      %p15 = scmp.ge.s32.totalorder %s14, 4
      %s24 = sphi 0, %s26
      %s27 = sphi 0, %s24
      %s28 = sphi 0, %s27
      %s44 = sphi 0, %s28
      %s48 = sphi 0, %s48
      %s50 = sphi 0, %s48
      %s51 = sphi 0, %s50
      %s65 = sphi 0, %s51
      %s69 = sphi 0, %s69
      %s71 = sphi 0, %s69
      %s72 = sphi 0, %s71
      %s86 = sphi 0, %s72
      %s90 = sphi 0, %s90
      %s92 = sphi 0, %s90
      %s93 = sphi 0, %s92
      %s107 = sphi 0, %s93
      %s111 = sphi 0, %s111
      %s113 = sphi 0, %s111
      %s114 = sphi 0, %s113
      %s128 = sphi 0, %s114
      %s134 = sphi 0, %s136
      %s137 = sphi 0, %s134
      %s138 = sphi 0, %s137
      %s154 = sphi 0, %s138
    $region4: #{tpu_custom_call.1} parent=1 // loop_header_branch
      %17 = sbr.rel (%p15) target = $region8
    $region5: #{tpu_custom_call.1} parent=1 // loop_body
      %s19 = ssub.s32 %s14, 1
      %s20 = ssub.s32 %s14, 2
      %s21 = sadd.s32 %s14, 1
      %s22 = ssub.s32 %s14, %s21
      %p23 = scmp.eq.s32.totalorder %s22, 0
      %s25 = sadd.s32 %s24, 1
      %s26 = scalar_select %p23, %s24, %s25
      %p29 = pneg %p23
      %p30 = scmp.eq.s32.totalorder %s14, 1
      %p31 = por %p29, %p30
      %p32 = scmp.ne.s32.totalorder %s24, %s27
      %p33 = scmp.eq.s32.totalorder %s14, 0
      %p34 = por %p32, %p33
      %p35 = scmp.ne.s32.totalorder %s24, %s27
      %p36 = scmp.eq.s32.totalorder %s19, 1
      %p37 = por %p35, %p36
      %p38 = scmp.ne.s32.totalorder %s27, %s28
      %p39 = scmp.eq.s32.totalorder %s19, 0
      %p40 = por %p38, %p39
      %p41 = scmp.ne.s32.totalorder %s27, %s28
      %p42 = scmp.eq.s32.totalorder %s20, 1
      %p43 = por %p41, %p42
      %p45 = scmp.ne.s32.totalorder %s28, %s44
      %p46 = scmp.eq.s32.totalorder %s20, 0
      %p47 = por %p45, %p46
      %s49 = sadd.s32 %s48, 1
      %p52 = scmp.eq.s32.totalorder %s14, 1
      %p53 = scmp.ne.s32.totalorder %s48, %s50
      %p54 = scmp.eq.s32.totalorder %s14, 0
      %p55 = por %p53, %p54
      %p56 = scmp.ne.s32.totalorder %s48, %s50
      %p57 = scmp.eq.s32.totalorder %s19, 1
      %p58 = por %p56, %p57
      %p59 = scmp.ne.s32.totalorder %s50, %s51
      %p60 = scmp.eq.s32.totalorder %s19, 0
      %p61 = por %p59, %p60
      %p62 = scmp.ne.s32.totalorder %s50, %s51
      %p63 = scmp.eq.s32.totalorder %s20, 1
      %p64 = por %p62, %p63
      %p66 = scmp.ne.s32.totalorder %s51, %s65
      %p67 = scmp.eq.s32.totalorder %s20, 0
      %p68 = por %p66, %p67
      %s70 = sadd.s32 %s69, 1
      %p73 = scmp.eq.s32.totalorder %s14, 1
      %p74 = scmp.ne.s32.totalorder %s69, %s71
      %p75 = scmp.eq.s32.totalorder %s14, 0
      %p76 = por %p74, %p75
      %p77 = scmp.ne.s32.totalorder %s69, %s71
      %p78 = scmp.eq.s32.totalorder %s19, 1
      %p79 = por %p77, %p78
      %p80 = scmp.ne.s32.totalorder %s71, %s72
      %p81 = scmp.eq.s32.totalorder %s19, 0
      %p82 = por %p80, %p81
      %p83 = scmp.ne.s32.totalorder %s71, %s72
      %p84 = scmp.eq.s32.totalorder %s20, 1
      %p85 = por %p83, %p84
      %p87 = scmp.ne.s32.totalorder %s72, %s86
      %p88 = scmp.eq.s32.totalorder %s20, 0
      %p89 = por %p87, %p88
      %s91 = sadd.s32 %s90, 1
      %p94 = scmp.eq.s32.totalorder %s14, 1
      %p95 = scmp.ne.s32.totalorder %s90, %s92
      %p96 = scmp.eq.s32.totalorder %s14, 0
      %p97 = por %p95, %p96
      %p98 = scmp.ne.s32.totalorder %s90, %s92
      %p99 = scmp.eq.s32.totalorder %s19, 1
      %p100 = por %p98, %p99
      %p101 = scmp.ne.s32.totalorder %s92, %s93
      %p102 = scmp.eq.s32.totalorder %s19, 0
      %p103 = por %p101, %p102
      %p104 = scmp.ne.s32.totalorder %s92, %s93
      %p105 = scmp.eq.s32.totalorder %s20, 1
      %p106 = por %p104, %p105
      %p108 = scmp.ne.s32.totalorder %s93, %s107
      %p109 = scmp.eq.s32.totalorder %s20, 0
      %p110 = por %p108, %p109
      %s112 = sadd.s32 %s111, 1
      %p115 = scmp.eq.s32.totalorder %s14, 1
      %p116 = scmp.ne.s32.totalorder %s111, %s113
      %p117 = scmp.eq.s32.totalorder %s14, 0
      %p118 = por %p116, %p117
      %p119 = scmp.ne.s32.totalorder %s111, %s113
      %p120 = scmp.eq.s32.totalorder %s19, 1
      %p121 = por %p119, %p120
      %p122 = scmp.ne.s32.totalorder %s113, %s114
      %p123 = scmp.eq.s32.totalorder %s19, 0
      %p124 = por %p122, %p123
      %p125 = scmp.ne.s32.totalorder %s113, %s114
      %p126 = scmp.eq.s32.totalorder %s20, 1
      %p127 = por %p125, %p126
      %p129 = scmp.ne.s32.totalorder %s114, %s128
      %p130 = scmp.eq.s32.totalorder %s20, 0
      %p131 = por %p129, %p130
      %s132 = ssub.s32 %s14, %s21
      %p133 = scmp.eq.s32.totalorder %s132, 0
      %s135 = sadd.s32 %s134, 1
      %s136 = scalar_select %p133, %s134, %s135
      %p139 = pneg %p133
      %p140 = scmp.eq.s32.totalorder %s14, 1
      %p141 = por %p139, %p140
      %p142 = scmp.ne.s32.totalorder %s134, %s137
      %p143 = scmp.eq.s32.totalorder %s14, 0
      %p144 = por %p142, %p143
      %p145 = scmp.ne.s32.totalorder %s134, %s137
      %p146 = scmp.eq.s32.totalorder %s19, 1
      %p147 = por %p145, %p146
      %p148 = scmp.ne.s32.totalorder %s137, %s138
      %p149 = scmp.eq.s32.totalorder %s19, 0
      %p150 = por %p148, %p149
      %p151 = scmp.ne.s32.totalorder %s137, %s138
      %p152 = scmp.eq.s32.totalorder %s20, 1
      %p153 = por %p151, %p152
      %p155 = scmp.ne.s32.totalorder %s138, %s154
      %p156 = scmp.eq.s32.totalorder %s20, 0
      %p157 = por %p155, %p156
      %p158 = scmp.le.s32.totalorder 1, %s14
      %p159 = scmp.lt.s32.totalorder %s14, 3
      %p160 = pnand %p158, %p159
      %p161 = pneg %p160
      // Predicated region
      $region9: #{tpu_custom_call.1} parent=5 // pred_check
        _
      $region10: #{tpu_custom_call.1} parent=5 // pred_check_branch
        %163 = sbr.rel (%p160) target = $region12
      $region11: #{tpu_custom_call.1} parent=5 // pred_region
        %s164 = ssub.s32 %s14, 1
        // Predicated region
        $region13: #{tpu_custom_call.1} parent=11 // pred_check
          %p165 = pneg %p61
        $region14: #{tpu_custom_call.1} parent=11 // pred_check_branch
          %167 = sbr.rel (%p165) target = $region16
        $region15: #{tpu_custom_call.1} parent=11 // pred_region
          _
        $region16: #{tpu_custom_call.1} parent=11 // pred_fallthru
          _
        // Predicated region
        $region17: #{tpu_custom_call.1} parent=11 // pred_check
          %p168 = pneg %p82
        $region18: #{tpu_custom_call.1} parent=11 // pred_check_branch
          %170 = sbr.rel (%p168) target = $region20
        $region19: #{tpu_custom_call.1} parent=11 // pred_region
          _
        $region20: #{tpu_custom_call.1} parent=11 // pred_fallthru
          _
        // Predicated region
        $region21: #{tpu_custom_call.1} parent=11 // pred_check
          %p171 = pneg %p103
        $region22: #{tpu_custom_call.1} parent=11 // pred_check_branch
          %173 = sbr.rel (%p171) target = $region24
        $region23: #{tpu_custom_call.1} parent=11 // pred_region
          _
        $region24: #{tpu_custom_call.1} parent=11 // pred_fallthru
          _
        // Predicated region
        $region25: #{tpu_custom_call.1} parent=11 // pred_check
          %p174 = pneg %p124
        $region26: #{tpu_custom_call.1} parent=11 // pred_check_branch
          %176 = sbr.rel (%p174) target = $region28
        $region27: #{tpu_custom_call.1} parent=11 // pred_region
          _
        $region28: #{tpu_custom_call.1} parent=11 // pred_fallthru
          _
      $region12: #{tpu_custom_call.1} parent=5 // pred_fallthru
        _
      %p177 = scmp.lt.s32.totalorder %s14, 2
      // Predicated region
      $region29: #{tpu_custom_call.1} parent=5 // pred_check
        %p178 = pneg %p177
      $region30: #{tpu_custom_call.1} parent=5 // pred_check_branch
        %180 = sbr.rel (%p178) target = $region32
      $region31: #{tpu_custom_call.1} parent=5 // pred_region
        // Predicated region
        $region33: #{tpu_custom_call.1} parent=31 // pred_check
          %p181 = pneg %p34
        $region34: #{tpu_custom_call.1} parent=31 // pred_check_branch
          %183 = sbr.rel (%p181) target = $region36
        $region35: #{tpu_custom_call.1} parent=31 // pred_region
          %p184 = scmp.lt.s32.totalorder %s14, 1
          %s185 = scalar_select %p184, %s14, 1
          %s186 = smul.addr %s185, 8
          %s187 = scalar_lea.vmem %s0, %s186
        $region36: #{tpu_custom_call.1} parent=31 // pred_fallthru
          _
      $region32: #{tpu_custom_call.1} parent=5 // pred_fallthru
        _
      %p188 = scmp.le.s32.totalorder 1, %s14
      %p189 = scmp.lt.s32.totalorder %s14, 3
      %p190 = pnand %p188, %p189
      %p191 = pneg %p190
      // Predicated region
      $region37: #{tpu_custom_call.1} parent=5 // pred_check
        _
      $region38: #{tpu_custom_call.1} parent=5 // pred_check_branch
        %193 = sbr.rel (%p190) target = $region40
      $region39: #{tpu_custom_call.1} parent=5 // pred_region
        %s194 = ssub.s32 %s14, 1
        %p195 = scmp.lt.s32.totalorder %s19, 1
        %s196 = scalar_select %p195, %s19, 1
        %s197 = smul.addr %s196, 8
        %s198 = scalar_lea.vmem %s0, %s197
        %p199 = pneg %p40
        %p200 = pneg %p37
        %p201 = pneg %p61
        %p202 = pneg %p58
        %p203 = pneg %p82
        %p204 = pneg %p79
        %p205 = pneg %p103
        %p206 = pneg %p100
        %p207 = pneg %p124
        %p208 = pneg %p121
        %p209 = pneg %p150
        %p210 = pneg %p147
        %s211 = sand.u32 %s137, 1
        %s212 = scalar_lea.sflag [#allocation3], %s211
        %s213 = sand.u32 %s137, 1
        %s214 = smul.addr %s213, 8
        %s215 = scalar_lea.vmem [#allocation2], %s214
        %p216 = scmp.lt.s32.totalorder %s19, 1
        %s217 = scalar_select %p216, %s19, 1
        %s218 = smul.addr %s217, 8
        %s219 = scalar_lea.vmem %s0, %s218
        %v220 = vld [vmem:[%s219] sm:$0xff]
        %v221 = vld [vmem:[%s1] sm:$0xff]
        %v222 = vld [vmem:[%s2] sm:$0x1]
        %v224 = vlaneseq
        %v225 = vshrl.u32 %v224, 7
        %v226 = vsub.s32 0, %v225
        %v227 = vrot.slane %v222, %v226
        %vm229 = vcmask 64512
        %v231 = vsel %vm229, %v220, 0
        %233 = vmatprep.subr.mxu0 0.0
        %234 = vmatpush1.msra.mxu0 %v221
        %235 = vmatprep.subr.mxu0 0.0
        %236 = vmatpush1.msra.mxu0 0.0
        %237 = vmatprep.subr.mxu0 0.0
        %238 = vmatpush1.msra.mxu0 0.0
        %239 = vmatprep.subr.mxu0 0.0
        %240 = vmatpush1.msra.mxu0 0.0
        %241 = vmatprep.subr.mxu0 0.0
        %242 = vmatpush1.msra.mxu0 0.0
        %243 = vmatprep.subr.mxu0 0.0
        %244 = vmatpush1.msra.mxu0 0.0
        %245 = vmatprep.subr.mxu0 0.0
        %246 = vmatpush1.msra.mxu0 0.0
        %247 = vmatprep.subr.mxu0 0.0
        %248 = vmatpush1.msra.mxu0 0.0
        %249 = vmatprep.subr.mxu0 0.0
        %250 = vmatpush1.msra.mxu0 0.0
        %251 = vmatprep.subr.mxu0 0.0
        %252 = vmatpush1.msra.mxu0 0.0
        %253 = vmatprep.subr.mxu0 0.0
        %254 = vmatpush1.msra.mxu0 0.0
        %255 = vmatprep.subr.mxu0 0.0
        %256 = vmatpush1.msra.mxu0 0.0
        %257 = vmatprep.subr.mxu0 0.0
        %258 = vmatpush1.msra.mxu0 0.0
        %259 = vmatprep.subr.mxu0 0.0
        %260 = vmatpush1.msra.mxu0 0.0
        %261 = vmatprep.subr.mxu0 0.0
        %262 = vmatpush1.msra.mxu0 0.0
        %263 = vmatprep.subr.mxu0 0.0
        %264 = vmatpush1.msra.mxu0 0.0
        %265 = vmatprep.subr.mxu0 0.0
        %266 = vmatpush1.msra.mxu0 0.0
        %267 = vmatprep.subr.mxu0 0.0
        %268 = vmatpush1.msra.mxu0 0.0
        %269 = vmatprep.subr.mxu0 0.0
        %270 = vmatpush1.msra.mxu0 0.0
        %271 = vmatprep.subr.mxu0 0.0
        %272 = vmatpush1.msra.mxu0 0.0
        %273 = vmatprep.subr.mxu0 0.0
        %274 = vmatpush1.msra.mxu0 0.0
        %275 = vmatprep.subr.mxu0 0.0
        %276 = vmatpush1.msra.mxu0 0.0
        %277 = vmatprep.subr.mxu0 0.0
        %278 = vmatpush1.msra.mxu0 0.0
        %279 = vmatprep.subr.mxu0 0.0
        %280 = vmatpush1.msra.mxu0 0.0
        %281 = vmatprep.subr.mxu0 0.0
        %282 = vmatpush1.msra.mxu0 0.0
        %283 = vmatprep.subr.mxu0 0.0
        %284 = vmatpush1.msra.mxu0 0.0
        %285 = vmatprep.subr.mxu0 0.0
        %286 = vmatpush1.msra.mxu0 0.0
        %287 = vmatprep.subr.mxu0 0.0
        %288 = vmatpush1.msra.mxu0 0.0
        %289 = vmatprep.subr.mxu0 0.0
        %290 = vmatpush1.msra.mxu0 0.0
        %291 = vmatprep.subr.mxu0 0.0
        %292 = vmatpush1.msra.mxu0 0.0
        %293 = vmatprep.subr.mxu0 0.0
        %294 = vmatpush1.msra.mxu0 0.0
        %295 = vmatprep.subr.mxu0 0.0
        %296 = vmatpush1.msra.mxu0 0.0
        %297 = vmatprep.mubr.f32.mxu0 0.0
        %298 = vmatmul.mubr.f32.gmra.mrb[0].mxu0 %v231
        %v299 = vpop.f32.mrb[0].mxu0
        %v300 = vadd.f32 %v227, %v299
        %v301 = vpop.f32.mrb[0].mxu0
        %302 = vdwg.mxu0
        %v303 = vmul.f32 %v300, 0.5
        %v304 = vmul.f32 %v300, 0.044715
        %v305 = vmul.f32 %v304, %v300
        %v306 = vmul.f32 %v305, %v300
        %v307 = vadd.f32 %v300, %v306
        %v308 = vmul.f32 %v307, 0.7978846
        %v309 = vtanh.pop %v308
        %v310 = vadd.f32 %v309, 1.0
        %v311 = vmul.f32 %v303, %v310
        %s312 = scalar_lea.vmem %s1, 8
        %v313 = vld [vmem:[%s312] sm:$0xff]
        %s314 = scalar_lea.vmem %s2, 1
        %v315 = vld [vmem:[%s314] sm:$0x1]
        %v317 = vlaneseq
        %v318 = vshrl.u32 %v317, 7
        %v319 = vsub.s32 0, %v318
        %v320 = vrot.slane %v315, %v319
        %322 = vrot.lane.b32.xlu0 %v220, 120
        %v323 = vpop.permute.xlu0 %322
        %v324 = vsel %vm229, %v323, 0
        %326 = vmatprep.subr.mxu0 0.0
        %327 = vmatpush1.msra.mxu0 %v313
        %328 = vmatprep.subr.mxu0 0.0
        %329 = vmatpush1.msra.mxu0 0.0
        %330 = vmatprep.subr.mxu0 0.0
        %331 = vmatpush1.msra.mxu0 0.0
        %332 = vmatprep.subr.mxu0 0.0
        %333 = vmatpush1.msra.mxu0 0.0
        %334 = vmatprep.subr.mxu0 0.0
        %335 = vmatpush1.msra.mxu0 0.0
        %336 = vmatprep.subr.mxu0 0.0
        %337 = vmatpush1.msra.mxu0 0.0
        %338 = vmatprep.subr.mxu0 0.0
        %339 = vmatpush1.msra.mxu0 0.0
        %340 = vmatprep.subr.mxu0 0.0
        %341 = vmatpush1.msra.mxu0 0.0
        %342 = vmatprep.subr.mxu0 0.0
        %343 = vmatpush1.msra.mxu0 0.0
        %344 = vmatprep.subr.mxu0 0.0
        %345 = vmatpush1.msra.mxu0 0.0
        %346 = vmatprep.subr.mxu0 0.0
        %347 = vmatpush1.msra.mxu0 0.0
        %348 = vmatprep.subr.mxu0 0.0
        %349 = vmatpush1.msra.mxu0 0.0
        %350 = vmatprep.subr.mxu0 0.0
        %351 = vmatpush1.msra.mxu0 0.0
        %352 = vmatprep.subr.mxu0 0.0
        %353 = vmatpush1.msra.mxu0 0.0
        %354 = vmatprep.subr.mxu0 0.0
        %355 = vmatpush1.msra.mxu0 0.0
        %356 = vmatprep.subr.mxu0 0.0
        %357 = vmatpush1.msra.mxu0 0.0
        %358 = vmatprep.subr.mxu0 0.0
        %359 = vmatpush1.msra.mxu0 0.0
        %360 = vmatprep.subr.mxu0 0.0
        %361 = vmatpush1.msra.mxu0 0.0
        %362 = vmatprep.subr.mxu0 0.0
        %363 = vmatpush1.msra.mxu0 0.0
        %364 = vmatprep.subr.mxu0 0.0
        %365 = vmatpush1.msra.mxu0 0.0
        %366 = vmatprep.subr.mxu0 0.0
        %367 = vmatpush1.msra.mxu0 0.0
        %368 = vmatprep.subr.mxu0 0.0
        %369 = vmatpush1.msra.mxu0 0.0
        %370 = vmatprep.subr.mxu0 0.0
        %371 = vmatpush1.msra.mxu0 0.0
        %372 = vmatprep.subr.mxu0 0.0
        %373 = vmatpush1.msra.mxu0 0.0
        %374 = vmatprep.subr.mxu0 0.0
        %375 = vmatpush1.msra.mxu0 0.0
        %376 = vmatprep.subr.mxu0 0.0
        %377 = vmatpush1.msra.mxu0 0.0
        %378 = vmatprep.subr.mxu0 0.0
        %379 = vmatpush1.msra.mxu0 0.0
        %380 = vmatprep.subr.mxu0 0.0
        %381 = vmatpush1.msra.mxu0 0.0
        %382 = vmatprep.subr.mxu0 0.0
        %383 = vmatpush1.msra.mxu0 0.0
        %384 = vmatprep.subr.mxu0 0.0
        %385 = vmatpush1.msra.mxu0 0.0
        %386 = vmatprep.subr.mxu0 0.0
        %387 = vmatpush1.msra.mxu0 0.0
        %388 = vmatprep.subr.mxu0 0.0
        %389 = vmatpush1.msra.mxu0 0.0
        %390 = vmatprep.mubr.f32.mxu0 0.0
        %391 = vmatmul.mubr.f32.gmra.mrb[0].mxu0 %v324
        %v392 = vpop.f32.mrb[0].mxu0
        %v393 = vadd.f32 %v320, %v392
        %v394 = vpop.f32.mrb[0].mxu0
        %395 = vdwg.mxu0
        %v396 = vmul.f32 %v393, 0.5
        %v397 = vmul.f32 %v393, 0.044715
        %v398 = vmul.f32 %v397, %v393
        %v399 = vmul.f32 %v398, %v393
        %v400 = vadd.f32 %v393, %v399
        %v401 = vmul.f32 %v400, 0.7978846
        %v402 = vtanh.pop %v401
        %v403 = vadd.f32 %v402, 1.0
        %v404 = vmul.f32 %v396, %v403
        %s405 = scalar_lea.vmem %s1, 16
        %v406 = vld [vmem:[%s405] sm:$0xff]
        %s407 = scalar_lea.vmem %s2, 2
        %v408 = vld [vmem:[%s407] sm:$0x1]
        %v410 = vlaneseq
        %v411 = vshrl.u32 %v410, 7
        %v412 = vsub.s32 0, %v411
        %v413 = vrot.slane %v408, %v412
        %415 = vrot.lane.b32.xlu0 %v220, 112
        %v416 = vpop.permute.xlu0 %415
        %v417 = vsel %vm229, %v416, 0
        %419 = vmatprep.subr.mxu0 0.0
        %420 = vmatpush1.msra.mxu0 %v406
        %421 = vmatprep.subr.mxu0 0.0
        %422 = vmatpush1.msra.mxu0 0.0
        %423 = vmatprep.subr.mxu0 0.0
        %424 = vmatpush1.msra.mxu0 0.0
        %425 = vmatprep.subr.mxu0 0.0
        %426 = vmatpush1.msra.mxu0 0.0
        %427 = vmatprep.subr.mxu0 0.0
        %428 = vmatpush1.msra.mxu0 0.0
        %429 = vmatprep.subr.mxu0 0.0
        %430 = vmatpush1.msra.mxu0 0.0
        %431 = vmatprep.subr.mxu0 0.0
        %432 = vmatpush1.msra.mxu0 0.0
        %433 = vmatprep.subr.mxu0 0.0
        %434 = vmatpush1.msra.mxu0 0.0
        %435 = vmatprep.subr.mxu0 0.0
        %436 = vmatpush1.msra.mxu0 0.0
        %437 = vmatprep.subr.mxu0 0.0
        %438 = vmatpush1.msra.mxu0 0.0
        %439 = vmatprep.subr.mxu0 0.0
        %440 = vmatpush1.msra.mxu0 0.0
        %441 = vmatprep.subr.mxu0 0.0
        %442 = vmatpush1.msra.mxu0 0.0
        %443 = vmatprep.subr.mxu0 0.0
        %444 = vmatpush1.msra.mxu0 0.0
        %445 = vmatprep.subr.mxu0 0.0
        %446 = vmatpush1.msra.mxu0 0.0
        %447 = vmatprep.subr.mxu0 0.0
        %448 = vmatpush1.msra.mxu0 0.0
        %449 = vmatprep.subr.mxu0 0.0
        %450 = vmatpush1.msra.mxu0 0.0
        %451 = vmatprep.subr.mxu0 0.0
        %452 = vmatpush1.msra.mxu0 0.0
        %453 = vmatprep.subr.mxu0 0.0
        %454 = vmatpush1.msra.mxu0 0.0
        %455 = vmatprep.subr.mxu0 0.0
        %456 = vmatpush1.msra.mxu0 0.0
        %457 = vmatprep.subr.mxu0 0.0
        %458 = vmatpush1.msra.mxu0 0.0
        %459 = vmatprep.subr.mxu0 0.0
        %460 = vmatpush1.msra.mxu0 0.0
        %461 = vmatprep.subr.mxu0 0.0
        %462 = vmatpush1.msra.mxu0 0.0
        %463 = vmatprep.subr.mxu0 0.0
        %464 = vmatpush1.msra.mxu0 0.0
        %465 = vmatprep.subr.mxu0 0.0
        %466 = vmatpush1.msra.mxu0 0.0
        %467 = vmatprep.subr.mxu0 0.0
        %468 = vmatpush1.msra.mxu0 0.0
        %469 = vmatprep.subr.mxu0 0.0
        %470 = vmatpush1.msra.mxu0 0.0
        %471 = vmatprep.subr.mxu0 0.0
        %472 = vmatpush1.msra.mxu0 0.0
        %473 = vmatprep.subr.mxu0 0.0
        %474 = vmatpush1.msra.mxu0 0.0
        %475 = vmatprep.subr.mxu0 0.0
        %476 = vmatpush1.msra.mxu0 0.0
        %477 = vmatprep.subr.mxu0 0.0
        %478 = vmatpush1.msra.mxu0 0.0
        %479 = vmatprep.subr.mxu0 0.0
        %480 = vmatpush1.msra.mxu0 0.0
        %481 = vmatprep.subr.mxu0 0.0
        %482 = vmatpush1.msra.mxu0 0.0
        %483 = vmatprep.mubr.f32.mxu0 0.0
        %484 = vmatmul.mubr.f32.gmra.mrb[0].mxu0 %v417
        %v485 = vpop.f32.mrb[0].mxu0
        %v486 = vadd.f32 %v413, %v485
        %v487 = vpop.f32.mrb[0].mxu0
        %488 = vdwg.mxu0
        %v489 = vmul.f32 %v486, 0.5
        %v490 = vmul.f32 %v486, 0.044715
        %v491 = vmul.f32 %v490, %v486
        %v492 = vmul.f32 %v491, %v486
        %v493 = vadd.f32 %v486, %v492
        %v494 = vmul.f32 %v493, 0.7978846
        %v495 = vtanh.pop %v494
        %v496 = vadd.f32 %v495, 1.0
        %v497 = vmul.f32 %v489, %v496
        %s498 = scalar_lea.vmem %s1, 24
        %v499 = vld [vmem:[%s498] sm:$0xff]
        %s500 = scalar_lea.vmem %s2, 3
        %v501 = vld [vmem:[%s500] sm:$0x1]
        %v503 = vlaneseq
        %v504 = vshrl.u32 %v503, 7
        %v505 = vsub.s32 0, %v504
        %v506 = vrot.slane %v501, %v505
        %508 = vrot.lane.b32.xlu0 %v220, 104
        %v509 = vpop.permute.xlu0 %508
        %v510 = vsel %vm229, %v509, 0
        %512 = vmatprep.subr.mxu0 0.0
        %513 = vmatpush1.msra.mxu0 %v499
        %514 = vmatprep.subr.mxu0 0.0
        %515 = vmatpush1.msra.mxu0 0.0
        %516 = vmatprep.subr.mxu0 0.0
        %517 = vmatpush1.msra.mxu0 0.0
        %518 = vmatprep.subr.mxu0 0.0
        %519 = vmatpush1.msra.mxu0 0.0
        %520 = vmatprep.subr.mxu0 0.0
        %521 = vmatpush1.msra.mxu0 0.0
        %522 = vmatprep.subr.mxu0 0.0
        %523 = vmatpush1.msra.mxu0 0.0
        %524 = vmatprep.subr.mxu0 0.0
        %525 = vmatpush1.msra.mxu0 0.0
        %526 = vmatprep.subr.mxu0 0.0
        %527 = vmatpush1.msra.mxu0 0.0
        %528 = vmatprep.subr.mxu0 0.0
        %529 = vmatpush1.msra.mxu0 0.0
        %530 = vmatprep.subr.mxu0 0.0
        %531 = vmatpush1.msra.mxu0 0.0
        %532 = vmatprep.subr.mxu0 0.0
        %533 = vmatpush1.msra.mxu0 0.0
        %534 = vmatprep.subr.mxu0 0.0
        %535 = vmatpush1.msra.mxu0 0.0
        %536 = vmatprep.subr.mxu0 0.0
        %537 = vmatpush1.msra.mxu0 0.0
        %538 = vmatprep.subr.mxu0 0.0
        %539 = vmatpush1.msra.mxu0 0.0
        %540 = vmatprep.subr.mxu0 0.0
        %541 = vmatpush1.msra.mxu0 0.0
        %542 = vmatprep.subr.mxu0 0.0
        %543 = vmatpush1.msra.mxu0 0.0
        %544 = vmatprep.subr.mxu0 0.0
        %545 = vmatpush1.msra.mxu0 0.0
        %546 = vmatprep.subr.mxu0 0.0
        %547 = vmatpush1.msra.mxu0 0.0
        %548 = vmatprep.subr.mxu0 0.0
        %549 = vmatpush1.msra.mxu0 0.0
        %550 = vmatprep.subr.mxu0 0.0
        %551 = vmatpush1.msra.mxu0 0.0
        %552 = vmatprep.subr.mxu0 0.0
        %553 = vmatpush1.msra.mxu0 0.0
        %554 = vmatprep.subr.mxu0 0.0
        %555 = vmatpush1.msra.mxu0 0.0
        %556 = vmatprep.subr.mxu0 0.0
        %557 = vmatpush1.msra.mxu0 0.0
        %558 = vmatprep.subr.mxu0 0.0
        %559 = vmatpush1.msra.mxu0 0.0
        %560 = vmatprep.subr.mxu0 0.0
        %561 = vmatpush1.msra.mxu0 0.0
        %562 = vmatprep.subr.mxu0 0.0
        %563 = vmatpush1.msra.mxu0 0.0
        %564 = vmatprep.subr.mxu0 0.0
        %565 = vmatpush1.msra.mxu0 0.0
        %566 = vmatprep.subr.mxu0 0.0
        %567 = vmatpush1.msra.mxu0 0.0
        %568 = vmatprep.subr.mxu0 0.0
        %569 = vmatpush1.msra.mxu0 0.0
        %570 = vmatprep.subr.mxu0 0.0
        %571 = vmatpush1.msra.mxu0 0.0
        %572 = vmatprep.subr.mxu0 0.0
        %573 = vmatpush1.msra.mxu0 0.0
        %574 = vmatprep.subr.mxu0 0.0
        %575 = vmatpush1.msra.mxu0 0.0
        %576 = vmatprep.mubr.f32.mxu0 0.0
        %577 = vmatmul.mubr.f32.gmra.mrb[0].mxu0 %v510
        %v578 = vpop.f32.mrb[0].mxu0
        %v579 = vadd.f32 %v506, %v578
        %v580 = vpop.f32.mrb[0].mxu0
        %581 = vdwg.mxu0
        %v582 = vmul.f32 %v579, 0.5
        %v583 = vmul.f32 %v579, 0.044715
        %v584 = vmul.f32 %v583, %v579
        %v585 = vmul.f32 %v584, %v579
        %v586 = vadd.f32 %v579, %v585
        %v587 = vmul.f32 %v586, 0.7978846
        %v588 = vtanh.pop %v587
        %v589 = vadd.f32 %v588, 1.0
        %v590 = vmul.f32 %v582, %v589
        %592 = vrot.lane.b32.xlu0 %v404, 8
        %v593 = vpop.permute.xlu0 %592
        %596 = vrot.lane.b32.xlu0 %v497, 16
        %v597 = vpop.permute.xlu0 %596
        %600 = vrot.lane.b32.xlu0 %v590, 24
        %v601 = vpop.permute.xlu0 %600
        %v603 = vsel %vm229, %v311, %v593
        %vm604 = vcmask 130048
        %v605 = vsel %vm604, %v603, %v597
        %vm606 = vcmask 195584
        %v607 = vsel %vm606, %v605, %v601
        %v608 = vld [vmem:[%s3] sm:$0xff]
        %v609 = vld [vmem:[%s3 + $0x8] sm:$0xff]
        %v610 = vld [vmem:[%s3 + $0x10] sm:$0xff]
        %v611 = vld [vmem:[%s3 + $0x18] sm:$0xff]
        %v612 = vld [vmem:[%s4] sm:$0x1]
        %v614 = vlaneseq
        %v615 = vshrl.u32 %v614, 7
        %v616 = vsub.s32 0, %v615
        %v617 = vrot.slane %v612, %v616
        %vm619 = vcmask 261120
        %v621 = vsel %vm619, %v607, 0
        %623 = vmatprep.subr.mxu0 0.0
        %624 = vmatpush1.msra.mxu0 %v608
        %625 = vmatprep.subr.mxu0 0.0
        %626 = vmatpush1.msra.mxu0 %v609
        %627 = vmatprep.subr.mxu0 0.0
        %628 = vmatpush1.msra.mxu0 %v610
        %629 = vmatprep.subr.mxu0 0.0
        %630 = vmatpush1.msra.mxu0 %v611
        %631 = vmatprep.subr.mxu0 0.0
        %632 = vmatpush1.msra.mxu0 0.0
        %633 = vmatprep.subr.mxu0 0.0
        %634 = vmatpush1.msra.mxu0 0.0
        %635 = vmatprep.subr.mxu0 0.0
        %636 = vmatpush1.msra.mxu0 0.0
        %637 = vmatprep.subr.mxu0 0.0
        %638 = vmatpush1.msra.mxu0 0.0
        %639 = vmatprep.subr.mxu0 0.0
        %640 = vmatpush1.msra.mxu0 0.0
        %641 = vmatprep.subr.mxu0 0.0
        %642 = vmatpush1.msra.mxu0 0.0
        %643 = vmatprep.subr.mxu0 0.0
        %644 = vmatpush1.msra.mxu0 0.0
        %645 = vmatprep.subr.mxu0 0.0
        %646 = vmatpush1.msra.mxu0 0.0
        %647 = vmatprep.subr.mxu0 0.0
        %648 = vmatpush1.msra.mxu0 0.0
        %649 = vmatprep.subr.mxu0 0.0
        %650 = vmatpush1.msra.mxu0 0.0
        %651 = vmatprep.subr.mxu0 0.0
        %652 = vmatpush1.msra.mxu0 0.0
        %653 = vmatprep.subr.mxu0 0.0
        %654 = vmatpush1.msra.mxu0 0.0
        %655 = vmatprep.subr.mxu0 0.0
        %656 = vmatpush1.msra.mxu0 0.0
        %657 = vmatprep.subr.mxu0 0.0
        %658 = vmatpush1.msra.mxu0 0.0
        %659 = vmatprep.subr.mxu0 0.0
        %660 = vmatpush1.msra.mxu0 0.0
        %661 = vmatprep.subr.mxu0 0.0
        %662 = vmatpush1.msra.mxu0 0.0
        %663 = vmatprep.subr.mxu0 0.0
        %664 = vmatpush1.msra.mxu0 0.0
        %665 = vmatprep.subr.mxu0 0.0
        %666 = vmatpush1.msra.mxu0 0.0
        %667 = vmatprep.subr.mxu0 0.0
        %668 = vmatpush1.msra.mxu0 0.0
        %669 = vmatprep.subr.mxu0 0.0
        %670 = vmatpush1.msra.mxu0 0.0
        %671 = vmatprep.subr.mxu0 0.0
        %672 = vmatpush1.msra.mxu0 0.0
        %673 = vmatprep.subr.mxu0 0.0
        %674 = vmatpush1.msra.mxu0 0.0
        %675 = vmatprep.subr.mxu0 0.0
        %676 = vmatpush1.msra.mxu0 0.0
        %677 = vmatprep.subr.mxu0 0.0
        %678 = vmatpush1.msra.mxu0 0.0
        %679 = vmatprep.subr.mxu0 0.0
        %680 = vmatpush1.msra.mxu0 0.0
        %681 = vmatprep.subr.mxu0 0.0
        %682 = vmatpush1.msra.mxu0 0.0
        %683 = vmatprep.subr.mxu0 0.0
        %684 = vmatpush1.msra.mxu0 0.0
        %685 = vmatprep.subr.mxu0 0.0
        %686 = vmatpush1.msra.mxu0 0.0
        %687 = vmatprep.mubr.f32.mxu0 0.0
        %688 = vmatmul.mubr.f32.gmra.mrb[0].mxu0 %v621
        %v689 = vpop.f32.mrb[0].mxu0
        %v690 = vadd.f32 %v617, %v689
        %v691 = vpop.f32.mrb[0].mxu0
        %692 = vdwg.mxu0
        %694 = vrot.lane.b32.xlu0 %v311, 120
        %v695 = vpop.permute.xlu0 %694
        %697 = vrot.lane.b32.xlu0 %v497, 8
        %v698 = vpop.permute.xlu0 %697
        %700 = vrot.lane.b32.xlu0 %v590, 16
        %v701 = vpop.permute.xlu0 %700
        %v703 = vsel %vm229, %v695, %v404
        %v704 = vsel %vm604, %v703, %v698
        %v705 = vsel %vm606, %v704, %v701
        %s706 = scalar_lea.vmem %s3, 32
        %v707 = vld [vmem:[%s706] sm:$0xff]
        %v708 = vld [vmem:[%s706 + $0x8] sm:$0xff]
        %v709 = vld [vmem:[%s706 + $0x10] sm:$0xff]
        %v710 = vld [vmem:[%s706 + $0x18] sm:$0xff]
        %s711 = scalar_lea.vmem %s4, 1
        %v712 = vld [vmem:[%s711] sm:$0x1]
        %v714 = vlaneseq
        %v715 = vshrl.u32 %v714, 7
        %v716 = vsub.s32 0, %v715
        %v717 = vrot.slane %v712, %v716
        %v720 = vsel %vm619, %v705, 0
        %722 = vmatprep.subr.mxu0 0.0
        %723 = vmatpush1.msra.mxu0 %v707
        %724 = vmatprep.subr.mxu0 0.0
        %725 = vmatpush1.msra.mxu0 %v708
        %726 = vmatprep.subr.mxu0 0.0
        %727 = vmatpush1.msra.mxu0 %v709
        %728 = vmatprep.subr.mxu0 0.0
        %729 = vmatpush1.msra.mxu0 %v710
        %730 = vmatprep.subr.mxu0 0.0
        %731 = vmatpush1.msra.mxu0 0.0
        %732 = vmatprep.subr.mxu0 0.0
        %733 = vmatpush1.msra.mxu0 0.0
        %734 = vmatprep.subr.mxu0 0.0
        %735 = vmatpush1.msra.mxu0 0.0
        %736 = vmatprep.subr.mxu0 0.0
        %737 = vmatpush1.msra.mxu0 0.0
        %738 = vmatprep.subr.mxu0 0.0
        %739 = vmatpush1.msra.mxu0 0.0
        %740 = vmatprep.subr.mxu0 0.0
        %741 = vmatpush1.msra.mxu0 0.0
        %742 = vmatprep.subr.mxu0 0.0
        %743 = vmatpush1.msra.mxu0 0.0
        %744 = vmatprep.subr.mxu0 0.0
        %745 = vmatpush1.msra.mxu0 0.0
        %746 = vmatprep.subr.mxu0 0.0
        %747 = vmatpush1.msra.mxu0 0.0
        %748 = vmatprep.subr.mxu0 0.0
        %749 = vmatpush1.msra.mxu0 0.0
        %750 = vmatprep.subr.mxu0 0.0
        %751 = vmatpush1.msra.mxu0 0.0
        %752 = vmatprep.subr.mxu0 0.0
        %753 = vmatpush1.msra.mxu0 0.0
        %754 = vmatprep.subr.mxu0 0.0
        %755 = vmatpush1.msra.mxu0 0.0
        %756 = vmatprep.subr.mxu0 0.0
        %757 = vmatpush1.msra.mxu0 0.0
        %758 = vmatprep.subr.mxu0 0.0
        %759 = vmatpush1.msra.mxu0 0.0
        %760 = vmatprep.subr.mxu0 0.0
        %761 = vmatpush1.msra.mxu0 0.0
        %762 = vmatprep.subr.mxu0 0.0
        %763 = vmatpush1.msra.mxu0 0.0
        %764 = vmatprep.subr.mxu0 0.0
        %765 = vmatpush1.msra.mxu0 0.0
        %766 = vmatprep.subr.mxu0 0.0
        %767 = vmatpush1.msra.mxu0 0.0
        %768 = vmatprep.subr.mxu0 0.0
        %769 = vmatpush1.msra.mxu0 0.0
        %770 = vmatprep.subr.mxu0 0.0
        %771 = vmatpush1.msra.mxu0 0.0
        %772 = vmatprep.subr.mxu0 0.0
        %773 = vmatpush1.msra.mxu0 0.0
        %774 = vmatprep.subr.mxu0 0.0
        %775 = vmatpush1.msra.mxu0 0.0
        %776 = vmatprep.subr.mxu0 0.0
        %777 = vmatpush1.msra.mxu0 0.0
        %778 = vmatprep.subr.mxu0 0.0
        %779 = vmatpush1.msra.mxu0 0.0
        %780 = vmatprep.subr.mxu0 0.0
        %781 = vmatpush1.msra.mxu0 0.0
        %782 = vmatprep.subr.mxu0 0.0
        %783 = vmatpush1.msra.mxu0 0.0
        %784 = vmatprep.subr.mxu0 0.0
        %785 = vmatpush1.msra.mxu0 0.0
        %786 = vmatprep.mubr.f32.mxu0 0.0
        %787 = vmatmul.mubr.f32.gmra.mrb[0].mxu0 %v720
        %v788 = vpop.f32.mrb[0].mxu0
        %v789 = vadd.f32 %v717, %v788
        %v790 = vpop.f32.mrb[0].mxu0
        %791 = vdwg.mxu0
        %792 = vrot.lane.b32.xlu0 %v311, 112
        %v793 = vpop.permute.xlu0 %792
        %795 = vrot.lane.b32.xlu0 %v404, 120
        %v796 = vpop.permute.xlu0 %795
        %798 = vrot.lane.b32.xlu0 %v590, 8
        %v799 = vpop.permute.xlu0 %798
        %v801 = vsel %vm229, %v793, %v796
        %v802 = vsel %vm604, %v801, %v497
        %v803 = vsel %vm606, %v802, %v799
        %s804 = scalar_lea.vmem %s3, 64
        %v805 = vld [vmem:[%s804] sm:$0xff]
        %v806 = vld [vmem:[%s804 + $0x8] sm:$0xff]
        %v807 = vld [vmem:[%s804 + $0x10] sm:$0xff]
        %v808 = vld [vmem:[%s804 + $0x18] sm:$0xff]
        %s809 = scalar_lea.vmem %s4, 2
        %v810 = vld [vmem:[%s809] sm:$0x1]
        %v812 = vlaneseq
        %v813 = vshrl.u32 %v812, 7
        %v814 = vsub.s32 0, %v813
        %v815 = vrot.slane %v810, %v814
        %v818 = vsel %vm619, %v803, 0
        %820 = vmatprep.subr.mxu0 0.0
        %821 = vmatpush1.msra.mxu0 %v805
        %822 = vmatprep.subr.mxu0 0.0
        %823 = vmatpush1.msra.mxu0 %v806
        %824 = vmatprep.subr.mxu0 0.0
        %825 = vmatpush1.msra.mxu0 %v807
        %826 = vmatprep.subr.mxu0 0.0
        %827 = vmatpush1.msra.mxu0 %v808
        %828 = vmatprep.subr.mxu0 0.0
        %829 = vmatpush1.msra.mxu0 0.0
        %830 = vmatprep.subr.mxu0 0.0
        %831 = vmatpush1.msra.mxu0 0.0
        %832 = vmatprep.subr.mxu0 0.0
        %833 = vmatpush1.msra.mxu0 0.0
        %834 = vmatprep.subr.mxu0 0.0
        %835 = vmatpush1.msra.mxu0 0.0
        %836 = vmatprep.subr.mxu0 0.0
        %837 = vmatpush1.msra.mxu0 0.0
        %838 = vmatprep.subr.mxu0 0.0
        %839 = vmatpush1.msra.mxu0 0.0
        %840 = vmatprep.subr.mxu0 0.0
        %841 = vmatpush1.msra.mxu0 0.0
        %842 = vmatprep.subr.mxu0 0.0
        %843 = vmatpush1.msra.mxu0 0.0
        %844 = vmatprep.subr.mxu0 0.0
        %845 = vmatpush1.msra.mxu0 0.0
        %846 = vmatprep.subr.mxu0 0.0
        %847 = vmatpush1.msra.mxu0 0.0
        %848 = vmatprep.subr.mxu0 0.0
        %849 = vmatpush1.msra.mxu0 0.0
        %850 = vmatprep.subr.mxu0 0.0
        %851 = vmatpush1.msra.mxu0 0.0
        %852 = vmatprep.subr.mxu0 0.0
        %853 = vmatpush1.msra.mxu0 0.0
        %854 = vmatprep.subr.mxu0 0.0
        %855 = vmatpush1.msra.mxu0 0.0
        %856 = vmatprep.subr.mxu0 0.0
        %857 = vmatpush1.msra.mxu0 0.0
        %858 = vmatprep.subr.mxu0 0.0
        %859 = vmatpush1.msra.mxu0 0.0
        %860 = vmatprep.subr.mxu0 0.0
        %861 = vmatpush1.msra.mxu0 0.0
        %862 = vmatprep.subr.mxu0 0.0
        %863 = vmatpush1.msra.mxu0 0.0
        %864 = vmatprep.subr.mxu0 0.0
        %865 = vmatpush1.msra.mxu0 0.0
        %866 = vmatprep.subr.mxu0 0.0
        %867 = vmatpush1.msra.mxu0 0.0
        %868 = vmatprep.subr.mxu0 0.0
        %869 = vmatpush1.msra.mxu0 0.0
        %870 = vmatprep.subr.mxu0 0.0
        %871 = vmatpush1.msra.mxu0 0.0
        %872 = vmatprep.subr.mxu0 0.0
        %873 = vmatpush1.msra.mxu0 0.0
        %874 = vmatprep.subr.mxu0 0.0
        %875 = vmatpush1.msra.mxu0 0.0
        %876 = vmatprep.subr.mxu0 0.0
        %877 = vmatpush1.msra.mxu0 0.0
        %878 = vmatprep.subr.mxu0 0.0
        %879 = vmatpush1.msra.mxu0 0.0
        %880 = vmatprep.subr.mxu0 0.0
        %881 = vmatpush1.msra.mxu0 0.0
        %882 = vmatprep.subr.mxu0 0.0
        %883 = vmatpush1.msra.mxu0 0.0
        %884 = vmatprep.mubr.f32.mxu0 0.0
        %885 = vmatmul.mubr.f32.gmra.mrb[0].mxu0 %v818
        %v886 = vpop.f32.mrb[0].mxu0
        %v887 = vadd.f32 %v815, %v886
        %v888 = vpop.f32.mrb[0].mxu0
        %889 = vdwg.mxu0
        %890 = vrot.lane.b32.xlu0 %v311, 104
        %v891 = vpop.permute.xlu0 %890
        %893 = vrot.lane.b32.xlu0 %v404, 112
        %v894 = vpop.permute.xlu0 %893
        %896 = vrot.lane.b32.xlu0 %v497, 120
        %v897 = vpop.permute.xlu0 %896
        %v899 = vsel %vm229, %v891, %v894
        %v900 = vsel %vm604, %v899, %v897
        %v901 = vsel %vm606, %v900, %v590
        %s902 = scalar_lea.vmem %s3, 96
        %v903 = vld [vmem:[%s902] sm:$0xff]
        %v904 = vld [vmem:[%s902 + $0x8] sm:$0xff]
        %v905 = vld [vmem:[%s902 + $0x10] sm:$0xff]
        %v906 = vld [vmem:[%s902 + $0x18] sm:$0xff]
        %s907 = scalar_lea.vmem %s4, 3
        %v908 = vld [vmem:[%s907] sm:$0x1]
        %v910 = vlaneseq
        %v911 = vshrl.u32 %v910, 7
        %v912 = vsub.s32 0, %v911
        %v913 = vrot.slane %v908, %v912
        %v916 = vsel %vm619, %v901, 0
        %918 = vmatprep.subr.mxu0 0.0
        %919 = vmatpush1.msra.mxu0 %v903
        %920 = vmatprep.subr.mxu0 0.0
        %921 = vmatpush1.msra.mxu0 %v904
        %922 = vmatprep.subr.mxu0 0.0
        %923 = vmatpush1.msra.mxu0 %v905
        %924 = vmatprep.subr.mxu0 0.0
        %925 = vmatpush1.msra.mxu0 %v906
        %926 = vmatprep.subr.mxu0 0.0
        %927 = vmatpush1.msra.mxu0 0.0
        %928 = vmatprep.subr.mxu0 0.0
        %929 = vmatpush1.msra.mxu0 0.0
        %930 = vmatprep.subr.mxu0 0.0
        %931 = vmatpush1.msra.mxu0 0.0
        %932 = vmatprep.subr.mxu0 0.0
        %933 = vmatpush1.msra.mxu0 0.0
        %934 = vmatprep.subr.mxu0 0.0
        %935 = vmatpush1.msra.mxu0 0.0
        %936 = vmatprep.subr.mxu0 0.0
        %937 = vmatpush1.msra.mxu0 0.0
        %938 = vmatprep.subr.mxu0 0.0
        %939 = vmatpush1.msra.mxu0 0.0
        %940 = vmatprep.subr.mxu0 0.0
        %941 = vmatpush1.msra.mxu0 0.0
        %942 = vmatprep.subr.mxu0 0.0
        %943 = vmatpush1.msra.mxu0 0.0
        %944 = vmatprep.subr.mxu0 0.0
        %945 = vmatpush1.msra.mxu0 0.0
        %946 = vmatprep.subr.mxu0 0.0
        %947 = vmatpush1.msra.mxu0 0.0
        %948 = vmatprep.subr.mxu0 0.0
        %949 = vmatpush1.msra.mxu0 0.0
        %950 = vmatprep.subr.mxu0 0.0
        %951 = vmatpush1.msra.mxu0 0.0
        %952 = vmatprep.subr.mxu0 0.0
        %953 = vmatpush1.msra.mxu0 0.0
        %954 = vmatprep.subr.mxu0 0.0
        %955 = vmatpush1.msra.mxu0 0.0
        %956 = vmatprep.subr.mxu0 0.0
        %957 = vmatpush1.msra.mxu0 0.0
        %958 = vmatprep.subr.mxu0 0.0
        %959 = vmatpush1.msra.mxu0 0.0
        %960 = vmatprep.subr.mxu0 0.0
        %961 = vmatpush1.msra.mxu0 0.0
        %962 = vmatprep.subr.mxu0 0.0
        %963 = vmatpush1.msra.mxu0 0.0
        %964 = vmatprep.subr.mxu0 0.0
        %965 = vmatpush1.msra.mxu0 0.0
        %966 = vmatprep.subr.mxu0 0.0
        %967 = vmatpush1.msra.mxu0 0.0
        %968 = vmatprep.subr.mxu0 0.0
        %969 = vmatpush1.msra.mxu0 0.0
        %970 = vmatprep.subr.mxu0 0.0
        %971 = vmatpush1.msra.mxu0 0.0
        %972 = vmatprep.subr.mxu0 0.0
        %973 = vmatpush1.msra.mxu0 0.0
        %974 = vmatprep.subr.mxu0 0.0
        %975 = vmatpush1.msra.mxu0 0.0
        %976 = vmatprep.subr.mxu0 0.0
        %977 = vmatpush1.msra.mxu0 0.0
        %978 = vmatprep.subr.mxu0 0.0
        %979 = vmatpush1.msra.mxu0 0.0
        %980 = vmatprep.subr.mxu0 0.0
        %981 = vmatpush1.msra.mxu0 0.0
        %982 = vmatprep.mubr.f32.mxu0 0.0
        %983 = vmatmul.mubr.f32.gmra.mrb[0].mxu0 %v916
        %v984 = vpop.f32.mrb[0].mxu0
        %v985 = vadd.f32 %v913, %v984
        %v986 = vpop.f32.mrb[0].mxu0
        %987 = vdwg.mxu0
        %989 = vrot.lane.b32.xlu0 %v789, 8
        %v990 = vpop.permute.xlu0 %989
        %993 = vrot.lane.b32.xlu0 %v887, 16
        %v994 = vpop.permute.xlu0 %993
        %997 = vrot.lane.b32.xlu0 %v985, 24
        %v998 = vpop.permute.xlu0 %997
        %v1000 = vsel %vm229, %v690, %v990
        %v1001 = vsel %vm604, %v1000, %v994
        %v1002 = vsel %vm606, %v1001, %v998
        %1003 = vst.msk [vmem:[%s215] sm:$0xff] %vm619, %v1002
        %s1004 = sand.u32 %s137, 1
        %s1005 = scalar_lea.sflag [#allocation3], %s1004
        %s1006 = sand.u32 %s137, 1
        %s1007 = smul.addr %s1006, 8
        %s1008 = scalar_lea.vmem [#allocation2], %s1007
        // Predicated region
        $region41: #{tpu_custom_call.1} parent=39 // pred_check
          %p1009 = pneg %p147
        $region42: #{tpu_custom_call.1} parent=39 // pred_check_branch
          %1011 = sbr.rel (%p1009) target = $region44
        $region43: #{tpu_custom_call.1} parent=39 // pred_region
          %s1013 = ssub.s32 128, 128
          %1014 = vsyncadd %s1005, %s1013
          %s1015 = smul.addr %s19, 128
          %s1016 = scalar_lea.hbm %s5, %s1015
          %s1018 = sshll.u32 %s1008, 4
          %s1019 = int_to_ptr.vmem [resolvable:$true] %s1018
          %1021 = dma.vmem_to_hbm [thread:$0]  %s1019, 128, %s1016, %s1005
        $region44: #{tpu_custom_call.1} parent=39 // pred_fallthru
          _
      $region40: #{tpu_custom_call.1} parent=5 // pred_fallthru
        _
      %p1022 = scmp.le.s32.totalorder 2, %s14
      // Predicated region
      $region45: #{tpu_custom_call.1} parent=5 // pred_check
        %p1023 = pneg %p1022
      $region46: #{tpu_custom_call.1} parent=5 // pred_check_branch
        %1025 = sbr.rel (%p1023) target = $region48
      $region47: #{tpu_custom_call.1} parent=5 // pred_region
        %s1026 = ssub.s32 %s14, 2
        // Predicated region
        $region49: #{tpu_custom_call.1} parent=47 // pred_check
          %p1027 = pneg %p153
        $region50: #{tpu_custom_call.1} parent=47 // pred_check_branch
          %1029 = sbr.rel (%p1027) target = $region52
        $region51: #{tpu_custom_call.1} parent=47 // pred_region
          %s1030 = sand.u32 %s138, 1
          %s1031 = scalar_lea.sflag [#allocation3], %s1030
          %s1032 = sand.u32 %s138, 1
          %s1033 = smul.addr %s1032, 8
          %s1034 = scalar_lea.vmem [#allocation2], %s1033
          %1035 = dma.done %s1031, 128
        $region52: #{tpu_custom_call.1} parent=47 // pred_fallthru
          _
      $region48: #{tpu_custom_call.1} parent=5 // pred_fallthru
        _
    $region6: #{tpu_custom_call.1} parent=1 // loop_footer
      %s18 = sadd.s32 1, %s14
    $region7: #{tpu_custom_call.1} parent=1 // loop_footer_branch
      %13 = sbr.rel target = $region3
    $region8: #{tpu_custom_call.1} parent=1 // loop_exit
      _
    %1036 = vsyncpa [#allocation3], 1
    %s1037 = scalar_lea.sflag [#allocation3], 1
    %1038 = vsyncpa %s1037, 1

</llo_original>
